<compile_context>
chip_gen: v7x
topology: tpu7x:2x2x1
jax: 0.10.0
libtpu: 0.0.40
codegen_flags: <defaults>
</compile_context>

<pallas_src>
import functools

import jax
import jax.numpy as jnp
from jax import lax
from jax.experimental import pallas as pl
from jax.experimental.pallas import tpu as pltpu

BN_EPS = 1e-5


def _cnn_block_kernel(x_ref, w_ref, bias_ref, gamma_ref, beta_ref, o_ref,
                      xp_ref, sum_ref, sq_ref, *,
                      K, stride, padding, L, L_out, C_out, Nb, count, n_blocks):
    """Fused Conv1d + train-mode BatchNorm1d + ReLU.

    x_ref    : (Nb, C_in, L)        bf16 (or f32)   — current batch block
    w_ref    : (K, C_out, C_in)     bf16 (or f32)   — conv taps
    bias_ref : (C_out, 1) f32, gamma_ref/beta_ref: (C_out, 1) f32
    o_ref    : (N, C_out, L_out) f32 — resident across the whole grid (also the y cache)
    xp_ref   : (Nb, C_in, L + 2*padding) scratch — in-kernel zero padding
    sum_ref / sq_ref : (C_out, 1) f32 scratch — running batch statistics
    """
    step = pl.program_id(0)

    @pl.when(step == 0)
    def _init():
        sum_ref[...] = jnp.zeros_like(sum_ref)
        sq_ref[...] = jnp.zeros_like(sq_ref)
        if padding > 0:
            # Zero once; only the interior is overwritten below, so the two padding
            # stripes stay zero for every subsequent grid step.
            xp_ref[...] = jnp.zeros_like(xp_ref)

    # Stage this batch block into the padded VMEM buffer (in-kernel padding, no jnp.pad).
    xp_ref[:, :, padding:padding + L] = x_ref[...]

    bias = bias_ref[...]                               # (C_out, 1) f32

    s_loc = jnp.zeros((C_out, 1), jnp.float32)
    q_loc = jnp.zeros((C_out, 1), jnp.float32)

    for n in range(Nb):                                # static unroll, Nb is small
        acc = jnp.zeros((C_out, L_out), jnp.float32)
        for k in range(K):                             # static unroll over taps
            if stride == 1:
                xk = xp_ref[n, :, k:k + L_out]                          # (C_in, L_out)
            else:
                xk = xp_ref[n, :, pl.ds(k, L_out, stride=stride)]       # strided taps
            # (C_out, C_in) @ (C_in, L_out) on the MXU, f32 accumulation.
            acc += jnp.dot(w_ref[k], xk, preferred_element_type=jnp.float32)
        y = acc + bias                                 # nn.Conv1d output (f32)
        o_ref[step * Nb + n] = y                       # cache in the resident output block
        s_loc += jnp.sum(y, axis=1, keepdims=True)
        q_loc += jnp.sum(y * y, axis=1, keepdims=True)

    sum_ref[...] += s_loc
    sq_ref[...] += q_loc

    # Finalize on the last grid step: fused BN affine + ReLU over the whole resident
    # output, then a single HBM writeback (done automatically by Pallas at grid end).
    @pl.when(step == n_blocks - 1)
    def _finalize():
        inv_cnt = 1.0 / float(count)
        mean = sum_ref[...] * inv_cnt                                   # (C_out, 1)
        var = jnp.maximum(sq_ref[...] * inv_cnt - mean * mean, 0.0)     # biased, clamped
        scale = gamma_ref[...] * lax.rsqrt(var + BN_EPS)                # (C_out, 1)
        shift = beta_ref[...] - mean * scale
        o_ref[...] = jnp.maximum(o_ref[...] * scale[None] + shift[None], 0.0)


def cnn_block_forward(x, weight, bias, gamma, beta, *, stride, padding,
                      compute_dtype=jnp.bfloat16):
    """x: (N, C_in, L); weight: (C_out, C_in, K); returns (N, C_out, L_out) f32.

    `compute_dtype` is the MXU input dtype (bf16 per the perf review; accumulation and all
    BN / ReLU math stay f32).  Pass jnp.float32 for bit-tighter numerics.
    """
    N, C_in, L = x.shape
    C_out, _, K = weight.shape
    L_out = (L + 2 * padding - K) // stride + 1
    L_pad = L + 2 * padding

    x_in = x.astype(compute_dtype)                                       # (N, C_in, L)
    w_taps = jnp.transpose(weight, (2, 0, 1)).astype(compute_dtype)      # (K, C_out, C_in)
    b2 = bias.reshape(C_out, 1).astype(jnp.float32)
    g2 = gamma.reshape(C_out, 1).astype(jnp.float32)
    be2 = beta.reshape(C_out, 1).astype(jnp.float32)

    itm = jnp.dtype(compute_dtype).itemsize
    # Batch-block size: largest divisor of N whose x block stays under ~2 MiB per buffer
    # (keeps double-buffered DMAs big enough to amortize the ~0.35us/step overhead).
    per_sample_bytes = C_in * L * itm
    nb_cap = max(1, (2 << 20) // max(1, per_sample_bytes))
    Nb = max(d for d in range(1, N + 1) if N % d == 0 and d <= nb_cap)
    n_blocks = N // Nb

    # VMEM budget: double-buffered x blocks + weights/vectors + resident output (the y
    # cache) + padded staging scratch + stats scratch.  Cap at 48 MiB (v7x has 64 MiB).
    vmem_need = (2 * Nb * C_in * L * itm            # x blocks (double-buffered)
                 + K * C_out * C_in * itm           # weights
                 + 3 * C_out * 4                    # bias / gamma / beta
                 + N * C_out * L_out * 4            # resident output block
                 + Nb * C_in * L_pad * itm          # padded staging scratch
                 + 2 * C_out * 4)                   # stats scratch
    vmem_limit = int(min(48 * 1024 * 1024, max(4 * 1024 * 1024, 2 * vmem_need)))

    conv_flops = 2 * N * C_out * L_out * C_in * K
    bytes_accessed = (x_in.size * itm + w_taps.size * itm
                      + 3 * C_out * 4 + N * C_out * L_out * 4)

    out = pl.pallas_call(
        functools.partial(_cnn_block_kernel, K=K, stride=stride, padding=padding, L=L,
                          L_out=L_out, C_out=C_out, Nb=Nb, count=N * L_out,
                          n_blocks=n_blocks),
        out_shape=jax.ShapeDtypeStruct((N, C_out, L_out), jnp.float32),
        grid=(n_blocks,),
        in_specs=[
            pl.BlockSpec((Nb, C_in, L), lambda s: (s, 0, 0)),
            pl.BlockSpec((K, C_out, C_in), lambda s: (0, 0, 0)),
            pl.BlockSpec((C_out, 1), lambda s: (0, 0)),
            pl.BlockSpec((C_out, 1), lambda s: (0, 0)),
            pl.BlockSpec((C_out, 1), lambda s: (0, 0)),
        ],
        # Constant block index -> output stays resident in VMEM for the whole grid and is
        # written back to HBM exactly once, after the in-place BN+ReLU on the last step.
        out_specs=pl.BlockSpec((N, C_out, L_out), lambda s: (0, 0, 0)),
        scratch_shapes=[
            pltpu.VMEM((Nb, C_in, L_pad), compute_dtype),   # in-kernel padded staging
            pltpu.VMEM((C_out, 1), jnp.float32),            # running sum
            pltpu.VMEM((C_out, 1), jnp.float32),            # running sum of squares
        ],
        compiler_params=pltpu.CompilerParams(
            # The grid axis carries the stats accumulators and the resident output block,
            # so it must stay serial ("arbitrary").
            dimension_semantics=("arbitrary",),
            vmem_limit_bytes=vmem_limit,
        ),
        cost_estimate=pl.CostEstimate(
            flops=conv_flops + 6 * N * C_out * L_out,
            transcendentals=C_out,
            bytes_accessed=int(bytes_accessed),
        ),
    )(x_in, w_taps, b2, g2, be2)

    return out


def reference_forward(x, weight, bias, gamma, beta, *, stride, padding):
    """Pure-JAX f32 reference (lax.conv + batch-stat BN + ReLU) for validation."""
    y = lax.conv_general_dilated(
        x, weight, window_strides=(stride,), padding=[(padding, padding)],
        dimension_numbers=("NCH", "OIH", "NCH"),
    ) + bias[None, :, None]
    mean = jnp.mean(y, axis=(0, 2), keepdims=True)
    var = jnp.mean((y - mean) ** 2, axis=(0, 2), keepdims=True)
    y = (y - mean) * lax.rsqrt(var + BN_EPS)
    y = y * gamma[None, :, None] + beta[None, :, None]
    return jnp.maximum(y, 0.0)


if __name__ == "__main__":
    # Small EEG-ish shapes: batch=4, in-channels=4, sequence length=256 (lane-dense L_out).
    N, C_in, L = 4, 4, 256
    C_out, K, stride, padding = 8, 3, 1, 1

    key = jax.random.PRNGKey(0)
    kx, kw, kb, kg, kbe = jax.random.split(key, 5)
    x = jax.random.normal(kx, (N, C_in, L), dtype=jnp.float32)
    weight = 0.1 * jax.random.normal(kw, (C_out, C_in, K), dtype=jnp.float32)
    bias = 0.05 * jax.random.normal(kb, (C_out,), dtype=jnp.float32)
    gamma = 1.0 + 0.1 * jax.random.normal(kg, (C_out,), dtype=jnp.float32)
    beta = 0.1 * jax.random.normal(kbe, (C_out,), dtype=jnp.float32)

    fwd = jax.jit(functools.partial(cnn_block_forward, stride=stride, padding=padding))
    out = jax.block_until_ready(fwd(x, weight, bias, gamma, beta))

    L_out = (L + 2 * padding - K) // stride + 1
    assert out.shape == (N, C_out, L_out)

    # Structural check: compare tightly against a reference whose conv inputs were rounded
    # to bf16 (isolates MXU input-dtype rounding from any kernel-structure error).
    xr = x.astype(jnp.bfloat16).astype(jnp.float32)
    wr = weight.astype(jnp.bfloat16).astype(jnp.float32)
    ref_b = reference_forward(xr, wr, bias, gamma, beta, stride=stride, padding=padding)
    assert jnp.allclose(out, ref_b, atol=5e-3, rtol=5e-3), "mismatch vs bf16-input reference"

    # Sanity check against the full-f32 module semantics (looser: bf16 MXU inputs).
    ref = reference_forward(x, weight, bias, gamma, beta, stride=stride, padding=padding)
    assert jnp.allclose(out, ref, atol=1e-1, rtol=1e-1), "mismatch vs f32 reference"

    print("KERNEL_OK")
</pallas_src>

<mosaic_0001>
module attributes {stable_mosaic.version = 11 : i64} {
  func.func @_cnn_block_kernel(%arg0: i32, %arg1: memref<4x4x256xbf16, #tpu.memory_space<vmem>>, %arg2: memref<3x8x4xbf16, #tpu.memory_space<vmem>>, %arg3: memref<8x1xf32, #tpu.memory_space<vmem>>, %arg4: memref<8x1xf32, #tpu.memory_space<vmem>>, %arg5: memref<8x1xf32, #tpu.memory_space<vmem>>, %arg6: memref<4x8x256xf32, #tpu.memory_space<vmem>>, %arg7: memref<4x4x258xbf16, #tpu.memory_space<vmem>>, %arg8: memref<8x1xf32, #tpu.memory_space<vmem>>, %arg9: memref<8x1xf32, #tpu.memory_space<vmem>>) attributes {dimension_semantics = [#tpu.dimension_semantics<arbitrary>], iteration_bounds = array<i64: 1>, scalar_prefetch = 0 : i64, scratch_operands = 3 : i64, tpu.core_type = #tpu.core_type<tc>, window_params = [{transform_indices = @transform_0, window_bounds = array<i64: 4, 4, 256>}, {pipeline_mode = #tpu.pipeline_mode<synchronous>, transform_indices = @transform_1, window_bounds = array<i64: 3, 8, 4>}, {pipeline_mode = #tpu.pipeline_mode<synchronous>, transform_indices = @transform_2, window_bounds = array<i64: 8, 1>}, {pipeline_mode = #tpu.pipeline_mode<synchronous>, transform_indices = @transform_3, window_bounds = array<i64: 8, 1>}, {pipeline_mode = #tpu.pipeline_mode<synchronous>, transform_indices = @transform_4, window_bounds = array<i64: 8, 1>}, {pipeline_mode = #tpu.pipeline_mode<synchronous>, transform_indices = @transform_5, window_bounds = array<i64: 4, 8, 256>}]} {
    %c0_i32 = arith.constant 0 : i32
    %0 = arith.cmpi eq, %arg0, %c0_i32 : i32
    %1 = arith.extui %0 : i1 to i32
    %c0_i32_0 = arith.constant 0 : i32
    %2 = arith.cmpi ne, %1, %c0_i32_0 : i32
    scf.if %2 {
      %cst_124 = arith.constant 0.000000e+00 : f32
      %153 = vector.broadcast %cst_124 : f32 to vector<8x1xf32>
      %c0_125 = arith.constant 0 : index
      %c0_126 = arith.constant 0 : index
      %154 = vector.load %arg8[%c0_125, %c0_126] : memref<8x1xf32, #tpu.memory_space<vmem>>, vector<8x1xf32>
      tpu.vector_store %arg8[%c0_125, %c0_126], %153 {strides = array<i32>} : memref<8x1xf32, #tpu.memory_space<vmem>>, vector<8x1xf32>,
      %cst_127 = arith.constant 0.000000e+00 : f32
      %155 = vector.broadcast %cst_127 : f32 to vector<8x1xf32>
      %c0_128 = arith.constant 0 : index
      %c0_129 = arith.constant 0 : index
      %156 = vector.load %arg9[%c0_128, %c0_129] : memref<8x1xf32, #tpu.memory_space<vmem>>, vector<8x1xf32>
      tpu.vector_store %arg9[%c0_128, %c0_129], %155 {strides = array<i32>} : memref<8x1xf32, #tpu.memory_space<vmem>>, vector<8x1xf32>,
      %cst_130 = arith.constant 0.000000e+00 : bf16
      %157 = vector.broadcast %cst_130 : bf16 to vector<4x4x258xbf16>
      %c0_131 = arith.constant 0 : index
      %c0_132 = arith.constant 0 : index
      %c0_133 = arith.constant 0 : index
      %158 = vector.load %arg7[%c0_131, %c0_132, %c0_133] : memref<4x4x258xbf16, #tpu.memory_space<vmem>>, vector<4x4x258xbf16>
      tpu.vector_store %arg7[%c0_131, %c0_132, %c0_133], %157 {strides = array<i32>} : memref<4x4x258xbf16, #tpu.memory_space<vmem>>, vector<4x4x258xbf16>,
    } else {
    }
    %c0 = arith.constant 0 : index
    %c0_1 = arith.constant 0 : index
    %c0_2 = arith.constant 0 : index
    %3 = vector.load %arg1[%c0, %c0_1, %c0_2] : memref<4x4x256xbf16, #tpu.memory_space<vmem>>, vector<4x4x256xbf16>
    %c0_3 = arith.constant 0 : index
    %c0_4 = arith.constant 0 : index
    %c1 = arith.constant 1 : index
    %4 = vector.load %arg7[%c0_3, %c0_4, %c1] : memref<4x4x258xbf16, #tpu.memory_space<vmem>>, vector<4x4x256xbf16>
    tpu.vector_store %arg7[%c0_3, %c0_4, %c1], %3 {strides = array<i32>} : memref<4x4x258xbf16, #tpu.memory_space<vmem>>, vector<4x4x256xbf16>,
    %c0_5 = arith.constant 0 : index
    %c0_6 = arith.constant 0 : index
    %5 = vector.load %arg3[%c0_5, %c0_6] : memref<8x1xf32, #tpu.memory_space<vmem>>, vector<8x1xf32>
    %cst = arith.constant 0.000000e+00 : f32
    %6 = vector.broadcast %cst : f32 to vector<8x1xf32>
    %cst_7 = arith.constant 0.000000e+00 : f32
    %7 = vector.broadcast %cst_7 : f32 to vector<8x1xf32>
    %cst_8 = arith.constant 0.000000e+00 : f32
    %8 = vector.broadcast %cst_8 : f32 to vector<8x256xf32>
    %c0_9 = arith.constant 0 : index
    %c0_10 = arith.constant 0 : index
    %c0_11 = arith.constant 0 : index
    %9 = vector.load %arg7[%c0_9, %c0_10, %c0_11] : memref<4x4x258xbf16, #tpu.memory_space<vmem>>, vector<1x4x256xbf16>
    %10 = vector.shape_cast %9 : vector<1x4x256xbf16> to vector<4x256xbf16>
    %c0_12 = arith.constant 0 : index
    %c0_13 = arith.constant 0 : index
    %c0_14 = arith.constant 0 : index
    %11 = vector.load %arg2[%c0_12, %c0_13, %c0_14] : memref<3x8x4xbf16, #tpu.memory_space<vmem>>, vector<1x8x4xbf16>
    %12 = vector.shape_cast %11 : vector<1x8x4xbf16> to vector<8x4xbf16>
    %cst_15 = arith.constant dense<0.000000e+00> : vector<8x256xf32>
    %13 = tpu.matmul %12, %10, %cst_15 {dimension_numbers = #tpu.dot_dimension_numbers<[1], [0], [0], [1], [0, 0, 1, 1], [], []>} : vector<8x4xbf16>, vector<4x256xbf16>, vector<8x256xf32> -> vector<8x256xf32>
    %14 = arith.addf %8, %13 : vector<8x256xf32>
    %c0_16 = arith.constant 0 : index
    %c0_17 = arith.constant 0 : index
    %c1_18 = arith.constant 1 : index
    %15 = vector.load %arg7[%c0_16, %c0_17, %c1_18] : memref<4x4x258xbf16, #tpu.memory_space<vmem>>, vector<1x4x256xbf16>
    %16 = vector.shape_cast %15 : vector<1x4x256xbf16> to vector<4x256xbf16>
    %c1_19 = arith.constant 1 : index
    %c0_20 = arith.constant 0 : index
    %c0_21 = arith.constant 0 : index
    %17 = vector.load %arg2[%c1_19, %c0_20, %c0_21] : memref<3x8x4xbf16, #tpu.memory_space<vmem>>, vector<1x8x4xbf16>
    %18 = vector.shape_cast %17 : vector<1x8x4xbf16> to vector<8x4xbf16>
    %cst_22 = arith.constant dense<0.000000e+00> : vector<8x256xf32>
    %19 = tpu.matmul %18, %16, %cst_22 {dimension_numbers = #tpu.dot_dimension_numbers<[1], [0], [0], [1], [0, 0, 1, 1], [], []>} : vector<8x4xbf16>, vector<4x256xbf16>, vector<8x256xf32> -> vector<8x256xf32>
    %20 = arith.addf %14, %19 : vector<8x256xf32>
    %c0_23 = arith.constant 0 : index
    %c0_24 = arith.constant 0 : index
    %c2 = arith.constant 2 : index
    %21 = vector.load %arg7[%c0_23, %c0_24, %c2] : memref<4x4x258xbf16, #tpu.memory_space<vmem>>, vector<1x4x256xbf16>
    %22 = vector.shape_cast %21 : vector<1x4x256xbf16> to vector<4x256xbf16>
    %c2_25 = arith.constant 2 : index
    %c0_26 = arith.constant 0 : index
    %c0_27 = arith.constant 0 : index
    %23 = vector.load %arg2[%c2_25, %c0_26, %c0_27] : memref<3x8x4xbf16, #tpu.memory_space<vmem>>, vector<1x8x4xbf16>
    %24 = vector.shape_cast %23 : vector<1x8x4xbf16> to vector<8x4xbf16>
    %cst_28 = arith.constant dense<0.000000e+00> : vector<8x256xf32>
    %25 = tpu.matmul %24, %22, %cst_28 {dimension_numbers = #tpu.dot_dimension_numbers<[1], [0], [0], [1], [0, 0, 1, 1], [], []>} : vector<8x4xbf16>, vector<4x256xbf16>, vector<8x256xf32> -> vector<8x256xf32>
    %26 = arith.addf %20, %25 : vector<8x256xf32>
    %27 = vector.broadcast %5 : vector<8x1xf32> to vector<8x256xf32>
    %28 = arith.addf %26, %27 : vector<8x256xf32>
    %c4_i32 = arith.constant 4 : i32
    %29 = arith.muli %arg0, %c4_i32 : i32
    %c0_i32_29 = arith.constant 0 : i32
    %30 = arith.addi %29, %c0_i32_29 : i32
    %31 = arith.index_cast %30 : i32 to index
    %c0_30 = arith.constant 0 : index
    %c0_31 = arith.constant 0 : index
    %32 = vector.load %arg6[%31, %c0_30, %c0_31] : memref<4x8x256xf32, #tpu.memory_space<vmem>>, vector<1x8x256xf32>
    %33 = vector.shape_cast %32 : vector<1x8x256xf32> to vector<8x256xf32>
    %34 = vector.shape_cast %28 : vector<8x256xf32> to vector<1x8x256xf32>
    tpu.vector_store %arg6[%31, %c0_30, %c0_31], %34 {strides = array<i32>} : memref<4x8x256xf32, #tpu.memory_space<vmem>>, vector<1x8x256xf32>,
    %cst_32 = arith.constant dense<0.000000e+00> : vector<8xf32>
    %35 = vector.multi_reduction <add>, %28, %cst_32 [1] : vector<8x256xf32> to vector<8xf32>
    %36 = vector.shape_cast %35 : vector<8xf32> to vector<8x1xf32>
    %37 = arith.addf %6, %36 : vector<8x1xf32>
    %38 = arith.mulf %28, %28 : vector<8x256xf32>
    %cst_33 = arith.constant dense<0.000000e+00> : vector<8xf32>
    %39 = vector.multi_reduction <add>, %38, %cst_33 [1] : vector<8x256xf32> to vector<8xf32>
    %40 = vector.shape_cast %39 : vector<8xf32> to vector<8x1xf32>
    %41 = arith.addf %7, %40 : vector<8x1xf32>
    %cst_34 = arith.constant 0.000000e+00 : f32
    %42 = vector.broadcast %cst_34 : f32 to vector<8x256xf32>
    %c1_35 = arith.constant 1 : index
    %c0_36 = arith.constant 0 : index
    %c0_37 = arith.constant 0 : index
    %43 = vector.load %arg7[%c1_35, %c0_36, %c0_37] : memref<4x4x258xbf16, #tpu.memory_space<vmem>>, vector<1x4x256xbf16>
    %44 = vector.shape_cast %43 : vector<1x4x256xbf16> to vector<4x256xbf16>
    %c0_38 = arith.constant 0 : index
    %c0_39 = arith.constant 0 : index
    %c0_40 = arith.constant 0 : index
    %45 = vector.load %arg2[%c0_38, %c0_39, %c0_40] : memref<3x8x4xbf16, #tpu.memory_space<vmem>>, vector<1x8x4xbf16>
    %46 = vector.shape_cast %45 : vector<1x8x4xbf16> to vector<8x4xbf16>
    %cst_41 = arith.constant dense<0.000000e+00> : vector<8x256xf32>
    %47 = tpu.matmul %46, %44, %cst_41 {dimension_numbers = #tpu.dot_dimension_numbers<[1], [0], [0], [1], [0, 0, 1, 1], [], []>} : vector<8x4xbf16>, vector<4x256xbf16>, vector<8x256xf32> -> vector<8x256xf32>
    %48 = arith.addf %42, %47 : vector<8x256xf32>
    %c1_42 = arith.constant 1 : index
    %c0_43 = arith.constant 0 : index
    %c1_44 = arith.constant 1 : index
    %49 = vector.load %arg7[%c1_42, %c0_43, %c1_44] : memref<4x4x258xbf16, #tpu.memory_space<vmem>>, vector<1x4x256xbf16>
    %50 = vector.shape_cast %49 : vector<1x4x256xbf16> to vector<4x256xbf16>
    %c1_45 = arith.constant 1 : index
    %c0_46 = arith.constant 0 : index
    %c0_47 = arith.constant 0 : index
    %51 = vector.load %arg2[%c1_45, %c0_46, %c0_47] : memref<3x8x4xbf16, #tpu.memory_space<vmem>>, vector<1x8x4xbf16>
    %52 = vector.shape_cast %51 : vector<1x8x4xbf16> to vector<8x4xbf16>
    %cst_48 = arith.constant dense<0.000000e+00> : vector<8x256xf32>
    %53 = tpu.matmul %52, %50, %cst_48 {dimension_numbers = #tpu.dot_dimension_numbers<[1], [0], [0], [1], [0, 0, 1, 1], [], []>} : vector<8x4xbf16>, vector<4x256xbf16>, vector<8x256xf32> -> vector<8x256xf32>
    %54 = arith.addf %48, %53 : vector<8x256xf32>
    %c1_49 = arith.constant 1 : index
    %c0_50 = arith.constant 0 : index
    %c2_51 = arith.constant 2 : index
    %55 = vector.load %arg7[%c1_49, %c0_50, %c2_51] : memref<4x4x258xbf16, #tpu.memory_space<vmem>>, vector<1x4x256xbf16>
    %56 = vector.shape_cast %55 : vector<1x4x256xbf16> to vector<4x256xbf16>
    %c2_52 = arith.constant 2 : index
    %c0_53 = arith.constant 0 : index
    %c0_54 = arith.constant 0 : index
    %57 = vector.load %arg2[%c2_52, %c0_53, %c0_54] : memref<3x8x4xbf16, #tpu.memory_space<vmem>>, vector<1x8x4xbf16>
    %58 = vector.shape_cast %57 : vector<1x8x4xbf16> to vector<8x4xbf16>
    %cst_55 = arith.constant dense<0.000000e+00> : vector<8x256xf32>
    %59 = tpu.matmul %58, %56, %cst_55 {dimension_numbers = #tpu.dot_dimension_numbers<[1], [0], [0], [1], [0, 0, 1, 1], [], []>} : vector<8x4xbf16>, vector<4x256xbf16>, vector<8x256xf32> -> vector<8x256xf32>
    %60 = arith.addf %54, %59 : vector<8x256xf32>
    %61 = vector.broadcast %5 : vector<8x1xf32> to vector<8x256xf32>
    %62 = arith.addf %60, %61 : vector<8x256xf32>
    %c4_i32_56 = arith.constant 4 : i32
    %63 = arith.muli %arg0, %c4_i32_56 : i32
    %c1_i32 = arith.constant 1 : i32
    %64 = arith.addi %63, %c1_i32 : i32
    %65 = arith.index_cast %64 : i32 to index
    %c0_57 = arith.constant 0 : index
    %c0_58 = arith.constant 0 : index
    %66 = vector.load %arg6[%65, %c0_57, %c0_58] : memref<4x8x256xf32, #tpu.memory_space<vmem>>, vector<1x8x256xf32>
    %67 = vector.shape_cast %66 : vector<1x8x256xf32> to vector<8x256xf32>
    %68 = vector.shape_cast %62 : vector<8x256xf32> to vector<1x8x256xf32>
    tpu.vector_store %arg6[%65, %c0_57, %c0_58], %68 {strides = array<i32>} : memref<4x8x256xf32, #tpu.memory_space<vmem>>, vector<1x8x256xf32>,
    %cst_59 = arith.constant dense<0.000000e+00> : vector<8xf32>
    %69 = vector.multi_reduction <add>, %62, %cst_59 [1] : vector<8x256xf32> to vector<8xf32>
    %70 = vector.shape_cast %69 : vector<8xf32> to vector<8x1xf32>
    %71 = arith.addf %37, %70 : vector<8x1xf32>
    %72 = arith.mulf %62, %62 : vector<8x256xf32>
    %cst_60 = arith.constant dense<0.000000e+00> : vector<8xf32>
    %73 = vector.multi_reduction <add>, %72, %cst_60 [1] : vector<8x256xf32> to vector<8xf32>
    %74 = vector.shape_cast %73 : vector<8xf32> to vector<8x1xf32>
    %75 = arith.addf %41, %74 : vector<8x1xf32>
    %cst_61 = arith.constant 0.000000e+00 : f32
    %76 = vector.broadcast %cst_61 : f32 to vector<8x256xf32>
    %c2_62 = arith.constant 2 : index
    %c0_63 = arith.constant 0 : index
    %c0_64 = arith.constant 0 : index
    %77 = vector.load %arg7[%c2_62, %c0_63, %c0_64] : memref<4x4x258xbf16, #tpu.memory_space<vmem>>, vector<1x4x256xbf16>
    %78 = vector.shape_cast %77 : vector<1x4x256xbf16> to vector<4x256xbf16>
    %c0_65 = arith.constant 0 : index
    %c0_66 = arith.constant 0 : index
    %c0_67 = arith.constant 0 : index
    %79 = vector.load %arg2[%c0_65, %c0_66, %c0_67] : memref<3x8x4xbf16, #tpu.memory_space<vmem>>, vector<1x8x4xbf16>
    %80 = vector.shape_cast %79 : vector<1x8x4xbf16> to vector<8x4xbf16>
    %cst_68 = arith.constant dense<0.000000e+00> : vector<8x256xf32>
    %81 = tpu.matmul %80, %78, %cst_68 {dimension_numbers = #tpu.dot_dimension_numbers<[1], [0], [0], [1], [0, 0, 1, 1], [], []>} : vector<8x4xbf16>, vector<4x256xbf16>, vector<8x256xf32> -> vector<8x256xf32>
    %82 = arith.addf %76, %81 : vector<8x256xf32>
    %c2_69 = arith.constant 2 : index
    %c0_70 = arith.constant 0 : index
    %c1_71 = arith.constant 1 : index
    %83 = vector.load %arg7[%c2_69, %c0_70, %c1_71] : memref<4x4x258xbf16, #tpu.memory_space<vmem>>, vector<1x4x256xbf16>
    %84 = vector.shape_cast %83 : vector<1x4x256xbf16> to vector<4x256xbf16>
    %c1_72 = arith.constant 1 : index
    %c0_73 = arith.constant 0 : index
    %c0_74 = arith.constant 0 : index
    %85 = vector.load %arg2[%c1_72, %c0_73, %c0_74] : memref<3x8x4xbf16, #tpu.memory_space<vmem>>, vector<1x8x4xbf16>
    %86 = vector.shape_cast %85 : vector<1x8x4xbf16> to vector<8x4xbf16>
    %cst_75 = arith.constant dense<0.000000e+00> : vector<8x256xf32>
    %87 = tpu.matmul %86, %84, %cst_75 {dimension_numbers = #tpu.dot_dimension_numbers<[1], [0], [0], [1], [0, 0, 1, 1], [], []>} : vector<8x4xbf16>, vector<4x256xbf16>, vector<8x256xf32> -> vector<8x256xf32>
    %88 = arith.addf %82, %87 : vector<8x256xf32>
    %c2_76 = arith.constant 2 : index
    %c0_77 = arith.constant 0 : index
    %c2_78 = arith.constant 2 : index
    %89 = vector.load %arg7[%c2_76, %c0_77, %c2_78] : memref<4x4x258xbf16, #tpu.memory_space<vmem>>, vector<1x4x256xbf16>
    %90 = vector.shape_cast %89 : vector<1x4x256xbf16> to vector<4x256xbf16>
    %c2_79 = arith.constant 2 : index
    %c0_80 = arith.constant 0 : index
    %c0_81 = arith.constant 0 : index
    %91 = vector.load %arg2[%c2_79, %c0_80, %c0_81] : memref<3x8x4xbf16, #tpu.memory_space<vmem>>, vector<1x8x4xbf16>
    %92 = vector.shape_cast %91 : vector<1x8x4xbf16> to vector<8x4xbf16>
    %cst_82 = arith.constant dense<0.000000e+00> : vector<8x256xf32>
    %93 = tpu.matmul %92, %90, %cst_82 {dimension_numbers = #tpu.dot_dimension_numbers<[1], [0], [0], [1], [0, 0, 1, 1], [], []>} : vector<8x4xbf16>, vector<4x256xbf16>, vector<8x256xf32> -> vector<8x256xf32>
    %94 = arith.addf %88, %93 : vector<8x256xf32>
    %95 = vector.broadcast %5 : vector<8x1xf32> to vector<8x256xf32>
    %96 = arith.addf %94, %95 : vector<8x256xf32>
    %c4_i32_83 = arith.constant 4 : i32
    %97 = arith.muli %arg0, %c4_i32_83 : i32
    %c2_i32 = arith.constant 2 : i32
    %98 = arith.addi %97, %c2_i32 : i32
    %99 = arith.index_cast %98 : i32 to index
    %c0_84 = arith.constant 0 : index
    %c0_85 = arith.constant 0 : index
    %100 = vector.load %arg6[%99, %c0_84, %c0_85] : memref<4x8x256xf32, #tpu.memory_space<vmem>>, vector<1x8x256xf32>
    %101 = vector.shape_cast %100 : vector<1x8x256xf32> to vector<8x256xf32>
    %102 = vector.shape_cast %96 : vector<8x256xf32> to vector<1x8x256xf32>
    tpu.vector_store %arg6[%99, %c0_84, %c0_85], %102 {strides = array<i32>} : memref<4x8x256xf32, #tpu.memory_space<vmem>>, vector<1x8x256xf32>,
    %cst_86 = arith.constant dense<0.000000e+00> : vector<8xf32>
    %103 = vector.multi_reduction <add>, %96, %cst_86 [1] : vector<8x256xf32> to vector<8xf32>
    %104 = vector.shape_cast %103 : vector<8xf32> to vector<8x1xf32>
    %105 = arith.addf %71, %104 : vector<8x1xf32>
    %106 = arith.mulf %96, %96 : vector<8x256xf32>
    %cst_87 = arith.constant dense<0.000000e+00> : vector<8xf32>
    %107 = vector.multi_reduction <add>, %106, %cst_87 [1] : vector<8x256xf32> to vector<8xf32>
    %108 = vector.shape_cast %107 : vector<8xf32> to vector<8x1xf32>
    %109 = arith.addf %75, %108 : vector<8x1xf32>
    %cst_88 = arith.constant 0.000000e+00 : f32
    %110 = vector.broadcast %cst_88 : f32 to vector<8x256xf32>
    %c3 = arith.constant 3 : index
    %c0_89 = arith.constant 0 : index
    %c0_90 = arith.constant 0 : index
    %111 = vector.load %arg7[%c3, %c0_89, %c0_90] : memref<4x4x258xbf16, #tpu.memory_space<vmem>>, vector<1x4x256xbf16>
    %112 = vector.shape_cast %111 : vector<1x4x256xbf16> to vector<4x256xbf16>
    %c0_91 = arith.constant 0 : index
    %c0_92 = arith.constant 0 : index
    %c0_93 = arith.constant 0 : index
    %113 = vector.load %arg2[%c0_91, %c0_92, %c0_93] : memref<3x8x4xbf16, #tpu.memory_space<vmem>>, vector<1x8x4xbf16>
    %114 = vector.shape_cast %113 : vector<1x8x4xbf16> to vector<8x4xbf16>
    %cst_94 = arith.constant dense<0.000000e+00> : vector<8x256xf32>
    %115 = tpu.matmul %114, %112, %cst_94 {dimension_numbers = #tpu.dot_dimension_numbers<[1], [0], [0], [1], [0, 0, 1, 1], [], []>} : vector<8x4xbf16>, vector<4x256xbf16>, vector<8x256xf32> -> vector<8x256xf32>
    %116 = arith.addf %110, %115 : vector<8x256xf32>
    %c3_95 = arith.constant 3 : index
    %c0_96 = arith.constant 0 : index
    %c1_97 = arith.constant 1 : index
    %117 = vector.load %arg7[%c3_95, %c0_96, %c1_97] : memref<4x4x258xbf16, #tpu.memory_space<vmem>>, vector<1x4x256xbf16>
    %118 = vector.shape_cast %117 : vector<1x4x256xbf16> to vector<4x256xbf16>
    %c1_98 = arith.constant 1 : index
    %c0_99 = arith.constant 0 : index
    %c0_100 = arith.constant 0 : index
    %119 = vector.load %arg2[%c1_98, %c0_99, %c0_100] : memref<3x8x4xbf16, #tpu.memory_space<vmem>>, vector<1x8x4xbf16>
    %120 = vector.shape_cast %119 : vector<1x8x4xbf16> to vector<8x4xbf16>
    %cst_101 = arith.constant dense<0.000000e+00> : vector<8x256xf32>
    %121 = tpu.matmul %120, %118, %cst_101 {dimension_numbers = #tpu.dot_dimension_numbers<[1], [0], [0], [1], [0, 0, 1, 1], [], []>} : vector<8x4xbf16>, vector<4x256xbf16>, vector<8x256xf32> -> vector<8x256xf32>
    %122 = arith.addf %116, %121 : vector<8x256xf32>
    %c3_102 = arith.constant 3 : index
    %c0_103 = arith.constant 0 : index
    %c2_104 = arith.constant 2 : index
    %123 = vector.load %arg7[%c3_102, %c0_103, %c2_104] : memref<4x4x258xbf16, #tpu.memory_space<vmem>>, vector<1x4x256xbf16>
    %124 = vector.shape_cast %123 : vector<1x4x256xbf16> to vector<4x256xbf16>
    %c2_105 = arith.constant 2 : index
    %c0_106 = arith.constant 0 : index
    %c0_107 = arith.constant 0 : index
    %125 = vector.load %arg2[%c2_105, %c0_106, %c0_107] : memref<3x8x4xbf16, #tpu.memory_space<vmem>>, vector<1x8x4xbf16>
    %126 = vector.shape_cast %125 : vector<1x8x4xbf16> to vector<8x4xbf16>
    %cst_108 = arith.constant dense<0.000000e+00> : vector<8x256xf32>
    %127 = tpu.matmul %126, %124, %cst_108 {dimension_numbers = #tpu.dot_dimension_numbers<[1], [0], [0], [1], [0, 0, 1, 1], [], []>} : vector<8x4xbf16>, vector<4x256xbf16>, vector<8x256xf32> -> vector<8x256xf32>
    %128 = arith.addf %122, %127 : vector<8x256xf32>
    %129 = vector.broadcast %5 : vector<8x1xf32> to vector<8x256xf32>
    %130 = arith.addf %128, %129 : vector<8x256xf32>
    %c4_i32_109 = arith.constant 4 : i32
    %131 = arith.muli %arg0, %c4_i32_109 : i32
    %c3_i32 = arith.constant 3 : i32
    %132 = arith.addi %131, %c3_i32 : i32
    %133 = arith.index_cast %132 : i32 to index
    %c0_110 = arith.constant 0 : index
    %c0_111 = arith.constant 0 : index
    %134 = vector.load %arg6[%133, %c0_110, %c0_111] : memref<4x8x256xf32, #tpu.memory_space<vmem>>, vector<1x8x256xf32>
    %135 = vector.shape_cast %134 : vector<1x8x256xf32> to vector<8x256xf32>
    %136 = vector.shape_cast %130 : vector<8x256xf32> to vector<1x8x256xf32>
    tpu.vector_store %arg6[%133, %c0_110, %c0_111], %136 {strides = array<i32>} : memref<4x8x256xf32, #tpu.memory_space<vmem>>, vector<1x8x256xf32>,
    %cst_112 = arith.constant dense<0.000000e+00> : vector<8xf32>
    %137 = vector.multi_reduction <add>, %130, %cst_112 [1] : vector<8x256xf32> to vector<8xf32>
    %138 = vector.shape_cast %137 : vector<8xf32> to vector<8x1xf32>
    %139 = arith.addf %105, %138 : vector<8x1xf32>
    %140 = arith.mulf %130, %130 : vector<8x256xf32>
    %cst_113 = arith.constant dense<0.000000e+00> : vector<8xf32>
    %141 = vector.multi_reduction <add>, %140, %cst_113 [1] : vector<8x256xf32> to vector<8xf32>
    %142 = vector.shape_cast %141 : vector<8xf32> to vector<8x1xf32>
    %143 = arith.addf %109, %142 : vector<8x1xf32>
    %c0_114 = arith.constant 0 : index
    %c0_115 = arith.constant 0 : index
    %144 = vector.load %arg8[%c0_114, %c0_115] : memref<8x1xf32, #tpu.memory_space<vmem>>, vector<8x1xf32>
    %145 = arith.addf %144, %139 : vector<8x1xf32>
    %c0_116 = arith.constant 0 : index
    %c0_117 = arith.constant 0 : index
    %146 = vector.load %arg8[%c0_116, %c0_117] : memref<8x1xf32, #tpu.memory_space<vmem>>, vector<8x1xf32>
    tpu.vector_store %arg8[%c0_116, %c0_117], %145 {strides = array<i32>} : memref<8x1xf32, #tpu.memory_space<vmem>>, vector<8x1xf32>,
    %c0_118 = arith.constant 0 : index
    %c0_119 = arith.constant 0 : index
    %147 = vector.load %arg9[%c0_118, %c0_119] : memref<8x1xf32, #tpu.memory_space<vmem>>, vector<8x1xf32>
    %148 = arith.addf %147, %143 : vector<8x1xf32>
    %c0_120 = arith.constant 0 : index
    %c0_121 = arith.constant 0 : index
    %149 = vector.load %arg9[%c0_120, %c0_121] : memref<8x1xf32, #tpu.memory_space<vmem>>, vector<8x1xf32>
    tpu.vector_store %arg9[%c0_120, %c0_121], %148 {strides = array<i32>} : memref<8x1xf32, #tpu.memory_space<vmem>>, vector<8x1xf32>,
    %c0_i32_122 = arith.constant 0 : i32
    %150 = arith.cmpi eq, %arg0, %c0_i32_122 : i32
    %151 = arith.extui %150 : i1 to i32
    %c0_i32_123 = arith.constant 0 : i32
    %152 = arith.cmpi ne, %151, %c0_i32_123 : i32
    scf.if %152 {
      %c0_124 = arith.constant 0 : index
      %c0_125 = arith.constant 0 : index
      %153 = vector.load %arg8[%c0_124, %c0_125] : memref<8x1xf32, #tpu.memory_space<vmem>>, vector<8x1xf32>
      %cst_126 = arith.constant 9.765625E-4 : f32
      %154 = vector.broadcast %cst_126 : f32 to vector<8x1xf32>
      %155 = arith.mulf %153, %154 : vector<8x1xf32>
      %c0_127 = arith.constant 0 : index
      %c0_128 = arith.constant 0 : index
      %156 = vector.load %arg9[%c0_127, %c0_128] : memref<8x1xf32, #tpu.memory_space<vmem>>, vector<8x1xf32>
      %cst_129 = arith.constant 9.765625E-4 : f32
      %157 = vector.broadcast %cst_129 : f32 to vector<8x1xf32>
      %158 = arith.mulf %156, %157 : vector<8x1xf32>
      %159 = arith.mulf %155, %155 : vector<8x1xf32>
      %160 = arith.subf %158, %159 : vector<8x1xf32>
      %cst_130 = arith.constant 0.000000e+00 : f32
      %161 = vector.broadcast %cst_130 : f32 to vector<8x1xf32>
      %162 = arith.maximumf %160, %161 : vector<8x1xf32>
      %c0_131 = arith.constant 0 : index
      %c0_132 = arith.constant 0 : index
      %163 = vector.load %arg4[%c0_131, %c0_132] : memref<8x1xf32, #tpu.memory_space<vmem>>, vector<8x1xf32>
      %cst_133 = arith.constant 9.99999974E-6 : f32
      %164 = vector.broadcast %cst_133 : f32 to vector<8x1xf32>
      %165 = arith.addf %162, %164 : vector<8x1xf32>
      %166 = math.rsqrt %165 : vector<8x1xf32>
      %167 = arith.mulf %163, %166 : vector<8x1xf32>
      %c0_134 = arith.constant 0 : index
      %c0_135 = arith.constant 0 : index
      %168 = vector.load %arg5[%c0_134, %c0_135] : memref<8x1xf32, #tpu.memory_space<vmem>>, vector<8x1xf32>
      %169 = arith.mulf %155, %167 : vector<8x1xf32>
      %170 = arith.subf %168, %169 : vector<8x1xf32>
      %c0_136 = arith.constant 0 : index
      %c0_137 = arith.constant 0 : index
      %c0_138 = arith.constant 0 : index
      %171 = vector.load %arg6[%c0_136, %c0_137, %c0_138] : memref<4x8x256xf32, #tpu.memory_space<vmem>>, vector<4x8x256xf32>
      %172 = vector.shape_cast %167 : vector<8x1xf32> to vector<1x8x1xf32>
      %173 = vector.broadcast %172 : vector<1x8x1xf32> to vector<4x8x256xf32>
      %174 = arith.mulf %171, %173 : vector<4x8x256xf32>
      %175 = vector.shape_cast %170 : vector<8x1xf32> to vector<1x8x1xf32>
      %176 = vector.broadcast %175 : vector<1x8x1xf32> to vector<4x8x256xf32>
      %177 = arith.addf %174, %176 : vector<4x8x256xf32>
      %cst_139 = arith.constant 0.000000e+00 : f32
      %178 = vector.broadcast %cst_139 : f32 to vector<4x8x256xf32>
      %179 = arith.maximumf %177, %178 : vector<4x8x256xf32>
      %c0_140 = arith.constant 0 : index
      %c0_141 = arith.constant 0 : index
      %c0_142 = arith.constant 0 : index
      %180 = vector.load %arg6[%c0_140, %c0_141, %c0_142] : memref<4x8x256xf32, #tpu.memory_space<vmem>>, vector<4x8x256xf32>
      tpu.vector_store %arg6[%c0_140, %c0_141, %c0_142], %179 {strides = array<i32>} : memref<4x8x256xf32, #tpu.memory_space<vmem>>, vector<4x8x256xf32>,
    } else {
    }
    return
  }
  func.func @transform_0(%arg0: i32) -> (i32, i32, i32) {
    %c0_i32 = arith.constant 0 : i32
    %c0_i32_0 = arith.constant 0 : i32
    %c0_i32_1 = arith.constant 0 : i32
    return %arg0, %c0_i32, %c0_i32_0 : i32, i32, i32
  }
  func.func @transform_1(%arg0: i32) -> (i32, i32, i32) {
    %c0_i32 = arith.constant 0 : i32
    %c0_i32_0 = arith.constant 0 : i32
    %c0_i32_1 = arith.constant 0 : i32
    %c0_i32_2 = arith.constant 0 : i32
    return %c0_i32, %c0_i32_0, %c0_i32_1 : i32, i32, i32
  }
  func.func @transform_2(%arg0: i32) -> (i32, i32) {
    %c0_i32 = arith.constant 0 : i32
    %c0_i32_0 = arith.constant 0 : i32
    %c0_i32_1 = arith.constant 0 : i32
    return %c0_i32, %c0_i32_0 : i32, i32
  }
  func.func @transform_3(%arg0: i32) -> (i32, i32) {
    %c0_i32 = arith.constant 0 : i32
    %c0_i32_0 = arith.constant 0 : i32
    %c0_i32_1 = arith.constant 0 : i32
    return %c0_i32, %c0_i32_0 : i32, i32
  }
  func.func @transform_4(%arg0: i32) -> (i32, i32) {
    %c0_i32 = arith.constant 0 : i32
    %c0_i32_0 = arith.constant 0 : i32
    %c0_i32_1 = arith.constant 0 : i32
    return %c0_i32, %c0_i32_0 : i32, i32
  }
  func.func @transform_5(%arg0: i32) -> (i32, i32, i32) {
    %c0_i32 = arith.constant 0 : i32
    %c0_i32_0 = arith.constant 0 : i32
    %c0_i32_1 = arith.constant 0 : i32
    %c0_i32_2 = arith.constant 0 : i32
    return %c0_i32, %c0_i32_0, %c0_i32_1 : i32, i32, i32
  }
}

</mosaic_0001>

<llo_original>
// kernel: cnn_block_forward.1
$region0: #{cnn_block_forward.1}
  #allocation0 [shape = 'u32[]', space=smem, size = 0x4, offset = 0x4, fixed_abs, tag = 'smem constant byte address 0x4 - core index']
  #allocation1 [shape = 'u32[144,128]{1,0:T(1,128)}', space=vmem, size = 0x12000, scoped, tag = 'internal scratch']
  #allocation2 [shape = 'bf16[4,4,258]{2,1,0:T(4,128)(2,1)}', space=vmem, size = 0x3000, scoped, tag = 'scratch operand']
  #allocation3 [shape = 'f32[8,1]{1,0:T(8,128)}', space=vmem, size = 0x1000, scoped, tag = 'scratch operand']
  #allocation4 [shape = 'f32[8,1]{1,0:T(8,128)}', space=vmem, size = 0x1000, scoped, tag = 'scratch operand']
  %s0 = inlined_call_operand.vmem [shape: bf16[4,4,256], index: 0, kind: input, shape index: {}]
  %s1 = inlined_call_operand.vmem [shape: bf16[3,8,4], index: 1, kind: input, shape index: {}]
  %s2 = inlined_call_operand.vmem [shape: f32[8,1], index: 2, kind: input, shape index: {}]
  %s3 = inlined_call_operand.vmem [shape: f32[8,1], index: 3, kind: input, shape index: {}]
  %s4 = inlined_call_operand.vmem [shape: f32[8,1], index: 4, kind: input, shape index: {}]
  %s5 = inlined_call_operand.hbm [shape: f32[4,8,256], index: 5, kind: output, shape index: {}]
  %s6 = sld [smem:[#allocation0]]
  $region38: #{cnn_block_forward.1} parent=0
    _
  %s8 = ssub.s32 1, %s6
  %s9 = scalar_select 0, %s8, %s6
  $region1: #{cnn_block_forward.1} parent=0
    #allocation5 [shape = 'u8[32768]{0}', space=vmem, size = 0x8000, scoped, tag = 'output window, operand 0, single buffered']
    #allocation6 [shape = 's32[1]{0}', space=sflag, size = 0x4, scoped, tag = 'scoped memory for cnn_block_forward.1']
    %10 = vsyncpa [#allocation6], 0
    // Predicated region
    $region2: #{cnn_block_forward.1} parent=1 // pred_check
      _
    $region3: #{cnn_block_forward.1} parent=1 // pred_check_branch
      %12 = sbr.rel (0) target = $region5
    $region4: #{cnn_block_forward.1} parent=1 // pred_region
      _
    $region5: #{cnn_block_forward.1} parent=1 // pred_fallthru
      _
    // Predicated region
    $region6: #{cnn_block_forward.1} parent=1 // pred_check
      _
    $region7: #{cnn_block_forward.1} parent=1 // pred_check_branch
      %14 = sbr.rel (0) target = $region9
    $region8: #{cnn_block_forward.1} parent=1 // pred_region
      _
    $region9: #{cnn_block_forward.1} parent=1 // pred_fallthru
      _
    // Predicated region
    $region10: #{cnn_block_forward.1} parent=1 // pred_check
      _
    $region11: #{cnn_block_forward.1} parent=1 // pred_check_branch
      %16 = sbr.rel (0) target = $region13
    $region12: #{cnn_block_forward.1} parent=1 // pred_region
      _
    $region13: #{cnn_block_forward.1} parent=1 // pred_fallthru
      _
    // Predicated region
    $region14: #{cnn_block_forward.1} parent=1 // pred_check
      _
    $region15: #{cnn_block_forward.1} parent=1 // pred_check_branch
      %18 = sbr.rel (0) target = $region17
    $region16: #{cnn_block_forward.1} parent=1 // pred_region
      _
    $region17: #{cnn_block_forward.1} parent=1 // pred_fallthru
      _
    // Predicated region
    $region18: #{cnn_block_forward.1} parent=1 // pred_check
      _
    $region19: #{cnn_block_forward.1} parent=1 // pred_check_branch
      %20 = sbr.rel (0) target = $region21
    $region20: #{cnn_block_forward.1} parent=1 // pred_region
      _
    $region21: #{cnn_block_forward.1} parent=1 // pred_fallthru
      _
    %p22 = scmp.eq.s32.totalorder 0, 0
    // Predicated region
    $region22: #{cnn_block_forward.1} parent=1 // pred_check
      %p23 = pneg %p22
    $region23: #{cnn_block_forward.1} parent=1 // pred_check_branch
      %25 = sbr.rel (%p23) target = $region25
    $region24: #{cnn_block_forward.1} parent=1 // pred_region
      %vm26 = vcmask 7168
      %27 = vst.msk [vmem:[#allocation3] sm:$0xff] %vm26, 0.0
      %28 = vst.msk [vmem:[#allocation4] sm:$0xff] %vm26, 0.0
      %vm29 = vcmask 1041408
      %vm30 = vcmask 1043458
      %vm31 = vmor %vm30, %vm29
      %vm32 = vcmask 13316
      %vm33 = vmor %vm32, %vm31
      %34 = vst.msk [vmem:[#allocation2] sm:$0x3f] %vm33, 0
      %35 = vst.msk [vmem:[#allocation2 + $0x6] sm:$0x3f] %vm33, 0
      %36 = vst.msk [vmem:[#allocation2 + $0xc] sm:$0x3f] %vm33, 0
      %37 = vst.msk [vmem:[#allocation2 + $0x12] sm:$0x3f] %vm33, 0
    $region25: #{cnn_block_forward.1} parent=1 // pred_fallthru
      _
    %v38 = vld [vmem:[%s0] sm:$0xf]
    %v39 = vld [vmem:[%s0 + $0x4] sm:$0xf]
    %v40 = vld [vmem:[%s0 + $0x8] sm:$0xf]
    %v41 = vld [vmem:[%s0 + $0xc] sm:$0xf]
    %46 = vrot.lane.b32.xlu0 %v38, 1
    %v47 = vpop.permute.xlu0 %46
    %48 = vrot.lane.b32.xlu0 %v39, 1
    %v49 = vpop.permute.xlu0 %48
    %50 = vrot.lane.b32.xlu0 %v40, 1
    %v51 = vpop.permute.xlu0 %50
    %52 = vrot.lane.b32.xlu0 %v41, 1
    %v53 = vpop.permute.xlu0 %52
    %v54 = vrot.slane %v47, 6
    %v55 = vrot.slane %v49, 6
    %v56 = vrot.slane %v51, 6
    %v57 = vrot.slane %v53, 6
    %vm58 = vcmask 7168
    %v59 = vsel %vm58, %v54, %v47
    %v60 = vsel %vm58, %v55, %v49
    %v61 = vsel %vm58, %v56, %v51
    %v62 = vsel %vm58, %v57, %v53
    %vm67 = vcmask 1041416
    %vm68 = vcmask 1043458
    %vm69 = vmor %vm68, %vm67
    %vm70 = vcmask 5124
    %vm71 = vmor %vm70, %vm69
    %72 = vst.msk [vmem:[#allocation2] sm:$0x3f] %vm71, %v59
    %73 = vst.msk [vmem:[#allocation2 + $0x6] sm:$0x3f] %vm71, %v60
    %74 = vst.msk [vmem:[#allocation2 + $0xc] sm:$0x3f] %vm71, %v61
    %75 = vst.msk [vmem:[#allocation2 + $0x12] sm:$0x3f] %vm71, %v62
    %v76 = vld [vmem:[%s2] sm:$0xff]
    %v77 = vld [vmem:[#allocation2] sm:$0xf]
    %v78 = vld [vmem:[%s1] sm:$0xf]
    %v79 = vld [vmem:[#allocation2] sm:$0x3f]
    %s80 = scalar_lea.vmem %s1, 4
    %v81 = vld [vmem:[%s80] sm:$0xf]
    %v83 = vcombine.high %v79, %v79
    %v85 = vunpack.c.l.s4 1983009808
    %v86 = vunpack.c.0.s8 %v85
    %v87 = vlaneseq
    %v88 = vshrl.u32 %v87, 7
    %v89 = vsub.s32 %v86, %v88
    %v90 = vrot.slane %v79, %v89
    %v92 = vunpack.c.l.s4 1983009808
    %v93 = vunpack.c.0.s8 %v92
    %v94 = vlaneseq
    %v95 = vshrl.u32 %v94, 7
    %v96 = vsub.s32 %v93, %v95
    %v97 = vrot.slane %v83, %v96
    %v98 = vcombine.high %v90, %v90
    %99 = vrot.lane.b32.xlu0 %v90, 127
    %v100 = vpop.permute.xlu0 %99
    %101 = vrot.lane.b32.xlu0 %v98, 127
    %v102 = vpop.permute.xlu0 %101
    %103 = vrot.lane.b32.xlu0 %v97, 127
    %v104 = vpop.permute.xlu0 %103
    %vm105 = vcmask 1039360
    %v106 = vsel %vm105, %v100, %v102
    %v107 = vsel %vm105, %v102, %v104
    %vm108 = vcmask 31744
    %v110 = vsel %vm108, %v81, 0
    %vm112 = vcmask 1041408
    %v114 = vsel %vm112, %v106, 0
    %v117 = vsel %vm112, %v107, 0
    %119 = vmatprep.subr.bf16.mxu0 %v117
    %120 = vmatpush1.bf16.msra.mxu0 %v114
    %121 = vmatprep.subr.bf16.mxu0 0
    %122 = vmatpush1.bf16.msra.mxu0 0
    %123 = vmatprep.subr.bf16.mxu0 0
    %124 = vmatpush1.bf16.msra.mxu0 0
    %125 = vmatprep.subr.bf16.mxu0 0
    %126 = vmatpush1.bf16.msra.mxu0 0
    %127 = vmatprep.subr.bf16.mxu0 0
    %128 = vmatpush1.bf16.msra.mxu0 0
    %129 = vmatprep.subr.bf16.mxu0 0
    %130 = vmatpush1.bf16.msra.mxu0 0
    %131 = vmatprep.subr.bf16.mxu0 0
    %132 = vmatpush1.bf16.msra.mxu0 0
    %133 = vmatprep.subr.bf16.mxu0 0
    %134 = vmatpush1.bf16.msra.mxu0 0
    %135 = vmatprep.subr.bf16.mxu0 0
    %136 = vmatpush1.bf16.msra.mxu0 0
    %137 = vmatprep.subr.bf16.mxu0 0
    %138 = vmatpush1.bf16.msra.mxu0 0
    %139 = vmatprep.subr.bf16.mxu0 0
    %140 = vmatpush1.bf16.msra.mxu0 0
    %141 = vmatprep.subr.bf16.mxu0 0
    %142 = vmatpush1.bf16.msra.mxu0 0
    %143 = vmatprep.subr.bf16.mxu0 0
    %144 = vmatpush1.bf16.msra.mxu0 0
    %145 = vmatprep.subr.bf16.mxu0 0
    %146 = vmatpush1.bf16.msra.mxu0 0
    %147 = vmatprep.subr.bf16.mxu0 0
    %148 = vmatpush1.bf16.msra.mxu0 0
    %149 = vmatprep.subr.bf16.mxu0 0
    %150 = vmatpush1.bf16.msra.mxu0 0
    %151 = vmatprep.mubr.bf16.mxu0 0
    %152 = vmatmul.mubr.bf16.gmra.mrb[0].mxu0 %v110
    %v153 = vpop.f32.mrb[0].mxu0
    %v154 = vadd.f32 0.0, %v153
    %v155 = vpop.f32.mrb[0].mxu0
    %v156 = vadd.f32 0.0, %v155
    %v157 = vpop.f32.mrb[0].mxu0
    %v158 = vpop.f32.mrb[0].mxu0
    %159 = vdwg.mxu0
    %v162 = vunpack.c.l.s4 1983009808
    %v163 = vunpack.c.0.s8 %v162
    %v164 = vlaneseq
    %v165 = vshrl.u32 %v164, 7
    %v166 = vsub.s32 %v163, %v165
    %v167 = vrot.slane %v77, %v166
    %v168 = vcombine.high %v167, %v167
    %v170 = vsel %vm108, %v78, 0
    %v173 = vsel %vm112, %v167, 0
    %v176 = vsel %vm112, %v168, 0
    %178 = vmatprep.subr.bf16.mxu0 %v176
    %179 = vmatpush1.bf16.msra.mxu0 %v173
    %180 = vmatprep.subr.bf16.mxu0 0
    %181 = vmatpush1.bf16.msra.mxu0 0
    %182 = vmatprep.subr.bf16.mxu0 0
    %183 = vmatpush1.bf16.msra.mxu0 0
    %184 = vmatprep.subr.bf16.mxu0 0
    %185 = vmatpush1.bf16.msra.mxu0 0
    %186 = vmatprep.subr.bf16.mxu0 0
    %187 = vmatpush1.bf16.msra.mxu0 0
    %188 = vmatprep.subr.bf16.mxu0 0
    %189 = vmatpush1.bf16.msra.mxu0 0
    %190 = vmatprep.subr.bf16.mxu0 0
    %191 = vmatpush1.bf16.msra.mxu0 0
    %192 = vmatprep.subr.bf16.mxu0 0
    %193 = vmatpush1.bf16.msra.mxu0 0
    %194 = vmatprep.subr.bf16.mxu0 0
    %195 = vmatpush1.bf16.msra.mxu0 0
    %196 = vmatprep.subr.bf16.mxu0 0
    %197 = vmatpush1.bf16.msra.mxu0 0
    %198 = vmatprep.subr.bf16.mxu0 0
    %199 = vmatpush1.bf16.msra.mxu0 0
    %200 = vmatprep.subr.bf16.mxu0 0
    %201 = vmatpush1.bf16.msra.mxu0 0
    %202 = vmatprep.subr.bf16.mxu0 0
    %203 = vmatpush1.bf16.msra.mxu0 0
    %204 = vmatprep.subr.bf16.mxu0 0
    %205 = vmatpush1.bf16.msra.mxu0 0
    %206 = vmatprep.subr.bf16.mxu0 0
    %207 = vmatpush1.bf16.msra.mxu0 0
    %208 = vmatprep.subr.bf16.mxu0 0
    %209 = vmatpush1.bf16.msra.mxu0 0
    %210 = vmatprep.mubr.bf16.mxu0 0
    %211 = vmatmul.mubr.bf16.gmra.mrb[0].mxu0 %v170
    %v212 = vpop.f32.mrb[0].mxu0
    %v213 = vadd.f32 %v154, %v212
    %v214 = vpop.f32.mrb[0].mxu0
    %v215 = vadd.f32 %v156, %v214
    %v216 = vpop.f32.mrb[0].mxu0
    %v217 = vpop.f32.mrb[0].mxu0
    %218 = vdwg.mxu0
    %v219 = vld [vmem:[#allocation2] sm:$0x3f]
    %s220 = scalar_lea.vmem %s1, 8
    %v221 = vld [vmem:[%s220] sm:$0xf]
    %v223 = vcombine.high %v219, %v219
    %v225 = vunpack.c.l.s4 1983009808
    %v226 = vunpack.c.0.s8 %v225
    %v227 = vlaneseq
    %v228 = vshrl.u32 %v227, 7
    %v229 = vsub.s32 %v226, %v228
    %v230 = vrot.slane %v219, %v229
    %v232 = vunpack.c.l.s4 1983009808
    %v233 = vunpack.c.0.s8 %v232
    %v234 = vlaneseq
    %v235 = vshrl.u32 %v234, 7
    %v236 = vsub.s32 %v233, %v235
    %v237 = vrot.slane %v223, %v236
    %v238 = vcombine.high %v230, %v230
    %239 = vrot.lane.b32.xlu0 %v230, 126
    %v240 = vpop.permute.xlu0 %239
    %241 = vrot.lane.b32.xlu0 %v238, 126
    %v242 = vpop.permute.xlu0 %241
    %243 = vrot.lane.b32.xlu0 %v237, 126
    %v244 = vpop.permute.xlu0 %243
    %vm245 = vcmask 1031168
    %v246 = vsel %vm245, %v240, %v242
    %v247 = vsel %vm245, %v242, %v244
    %v249 = vsel %vm108, %v221, 0
    %v252 = vsel %vm112, %v246, 0
    %v255 = vsel %vm112, %v247, 0
    %257 = vmatprep.subr.bf16.mxu0 %v255
    %258 = vmatpush1.bf16.msra.mxu0 %v252
    %259 = vmatprep.subr.bf16.mxu0 0
    %260 = vmatpush1.bf16.msra.mxu0 0
    %261 = vmatprep.subr.bf16.mxu0 0
    %262 = vmatpush1.bf16.msra.mxu0 0
    %263 = vmatprep.subr.bf16.mxu0 0
    %264 = vmatpush1.bf16.msra.mxu0 0
    %265 = vmatprep.subr.bf16.mxu0 0
    %266 = vmatpush1.bf16.msra.mxu0 0
    %267 = vmatprep.subr.bf16.mxu0 0
    %268 = vmatpush1.bf16.msra.mxu0 0
    %269 = vmatprep.subr.bf16.mxu0 0
    %270 = vmatpush1.bf16.msra.mxu0 0
    %271 = vmatprep.subr.bf16.mxu0 0
    %272 = vmatpush1.bf16.msra.mxu0 0
    %273 = vmatprep.subr.bf16.mxu0 0
    %274 = vmatpush1.bf16.msra.mxu0 0
    %275 = vmatprep.subr.bf16.mxu0 0
    %276 = vmatpush1.bf16.msra.mxu0 0
    %277 = vmatprep.subr.bf16.mxu0 0
    %278 = vmatpush1.bf16.msra.mxu0 0
    %279 = vmatprep.subr.bf16.mxu0 0
    %280 = vmatpush1.bf16.msra.mxu0 0
    %281 = vmatprep.subr.bf16.mxu0 0
    %282 = vmatpush1.bf16.msra.mxu0 0
    %283 = vmatprep.subr.bf16.mxu0 0
    %284 = vmatpush1.bf16.msra.mxu0 0
    %285 = vmatprep.subr.bf16.mxu0 0
    %286 = vmatpush1.bf16.msra.mxu0 0
    %287 = vmatprep.subr.bf16.mxu0 0
    %288 = vmatpush1.bf16.msra.mxu0 0
    %289 = vmatprep.mubr.bf16.mxu0 0
    %290 = vmatmul.mubr.bf16.gmra.mrb[0].mxu0 %v249
    %v291 = vpop.f32.mrb[0].mxu0
    %v292 = vadd.f32 0.0, %v291
    %v293 = vpop.f32.mrb[0].mxu0
    %v294 = vadd.f32 0.0, %v293
    %v295 = vpop.f32.mrb[0].mxu0
    %v296 = vpop.f32.mrb[0].mxu0
    %297 = vdwg.mxu0
    %v298 = vadd.f32 %v213, %v292
    %v299 = vadd.f32 %v215, %v294
    %301 = vset.pattern.permute.xlu0 0
    %302 = vperm.xlu0 %301, %v76
    %v303 = vpop.permute.xlu0 %302
    %v305 = vadd.f32 %v298, %v303
    %v306 = vadd.f32 %v299, %v303
    %s307 = smul.u32 0, 4
    %s308 = smul.u32 %s307, 2
    %s309 = smul.addr %s308, 8
    %s310 = scalar_lea.vmem [#allocation5], %s309
    %311 = vst [vmem:[%s310] sm:$0xff] %v305
    %312 = vst [vmem:[%s310 + $0x8] sm:$0xff] %v306
    %v313 = vadd.f32 %v305, %v306
    %314 = vadd.xlane.f32.xlu0 %v313
    %v315 = vpop.xlane.xlu0 %314
    %v316 = vadd.f32 %v315, 0.0
    %v317 = vmul.f32 %v305, %v305
    %v318 = vmul.f32 %v306, %v306
    %v319 = vadd.f32 %v317, %v318
    %320 = vadd.xlane.f32.xlu0 %v319
    %v321 = vpop.xlane.xlu0 %320
    %v322 = vadd.f32 %v321, 0.0
    %s323 = scalar_lea.vmem [#allocation2], 6
    %v324 = vld [vmem:[%s323] sm:$0xf]
    %v325 = vld [vmem:[%s1] sm:$0xf]
    %v326 = vld [vmem:[%s323] sm:$0x3f]
    %v327 = vld [vmem:[%s80] sm:$0xf]
    %v329 = vcombine.high %v326, %v326
    %v331 = vunpack.c.l.s4 1983009808
    %v332 = vunpack.c.0.s8 %v331
    %v333 = vlaneseq
    %v334 = vshrl.u32 %v333, 7
    %v335 = vsub.s32 %v332, %v334
    %v336 = vrot.slane %v326, %v335
    %v338 = vunpack.c.l.s4 1983009808
    %v339 = vunpack.c.0.s8 %v338
    %v340 = vlaneseq
    %v341 = vshrl.u32 %v340, 7
    %v342 = vsub.s32 %v339, %v341
    %v343 = vrot.slane %v329, %v342
    %v344 = vcombine.high %v336, %v336
    %345 = vrot.lane.b32.xlu0 %v336, 127
    %v346 = vpop.permute.xlu0 %345
    %347 = vrot.lane.b32.xlu0 %v344, 127
    %v348 = vpop.permute.xlu0 %347
    %349 = vrot.lane.b32.xlu0 %v343, 127
    %v350 = vpop.permute.xlu0 %349
    %v351 = vsel %vm105, %v346, %v348
    %v352 = vsel %vm105, %v348, %v350
    %v354 = vsel %vm108, %v327, 0
    %v357 = vsel %vm112, %v351, 0
    %v360 = vsel %vm112, %v352, 0
    %362 = vmatprep.subr.bf16.mxu0 %v360
    %363 = vmatpush1.bf16.msra.mxu0 %v357
    %364 = vmatprep.subr.bf16.mxu0 0
    %365 = vmatpush1.bf16.msra.mxu0 0
    %366 = vmatprep.subr.bf16.mxu0 0
    %367 = vmatpush1.bf16.msra.mxu0 0
    %368 = vmatprep.subr.bf16.mxu0 0
    %369 = vmatpush1.bf16.msra.mxu0 0
    %370 = vmatprep.subr.bf16.mxu0 0
    %371 = vmatpush1.bf16.msra.mxu0 0
    %372 = vmatprep.subr.bf16.mxu0 0
    %373 = vmatpush1.bf16.msra.mxu0 0
    %374 = vmatprep.subr.bf16.mxu0 0
    %375 = vmatpush1.bf16.msra.mxu0 0
    %376 = vmatprep.subr.bf16.mxu0 0
    %377 = vmatpush1.bf16.msra.mxu0 0
    %378 = vmatprep.subr.bf16.mxu0 0
    %379 = vmatpush1.bf16.msra.mxu0 0
    %380 = vmatprep.subr.bf16.mxu0 0
    %381 = vmatpush1.bf16.msra.mxu0 0
    %382 = vmatprep.subr.bf16.mxu0 0
    %383 = vmatpush1.bf16.msra.mxu0 0
    %384 = vmatprep.subr.bf16.mxu0 0
    %385 = vmatpush1.bf16.msra.mxu0 0
    %386 = vmatprep.subr.bf16.mxu0 0
    %387 = vmatpush1.bf16.msra.mxu0 0
    %388 = vmatprep.subr.bf16.mxu0 0
    %389 = vmatpush1.bf16.msra.mxu0 0
    %390 = vmatprep.subr.bf16.mxu0 0
    %391 = vmatpush1.bf16.msra.mxu0 0
    %392 = vmatprep.subr.bf16.mxu0 0
    %393 = vmatpush1.bf16.msra.mxu0 0
    %394 = vmatprep.mubr.bf16.mxu0 0
    %395 = vmatmul.mubr.bf16.gmra.mrb[0].mxu0 %v354
    %v396 = vpop.f32.mrb[0].mxu0
    %v397 = vadd.f32 0.0, %v396
    %v398 = vpop.f32.mrb[0].mxu0
    %v399 = vadd.f32 0.0, %v398
    %v400 = vpop.f32.mrb[0].mxu0
    %v401 = vpop.f32.mrb[0].mxu0
    %402 = vdwg.mxu0
    %v405 = vunpack.c.l.s4 1983009808
    %v406 = vunpack.c.0.s8 %v405
    %v407 = vlaneseq
    %v408 = vshrl.u32 %v407, 7
    %v409 = vsub.s32 %v406, %v408
    %v410 = vrot.slane %v324, %v409
    %v411 = vcombine.high %v410, %v410
    %v413 = vsel %vm108, %v325, 0
    %v416 = vsel %vm112, %v410, 0
    %v419 = vsel %vm112, %v411, 0
    %421 = vmatprep.subr.bf16.mxu0 %v419
    %422 = vmatpush1.bf16.msra.mxu0 %v416
    %423 = vmatprep.subr.bf16.mxu0 0
    %424 = vmatpush1.bf16.msra.mxu0 0
    %425 = vmatprep.subr.bf16.mxu0 0
    %426 = vmatpush1.bf16.msra.mxu0 0
    %427 = vmatprep.subr.bf16.mxu0 0
    %428 = vmatpush1.bf16.msra.mxu0 0
    %429 = vmatprep.subr.bf16.mxu0 0
    %430 = vmatpush1.bf16.msra.mxu0 0
    %431 = vmatprep.subr.bf16.mxu0 0
    %432 = vmatpush1.bf16.msra.mxu0 0
    %433 = vmatprep.subr.bf16.mxu0 0
    %434 = vmatpush1.bf16.msra.mxu0 0
    %435 = vmatprep.subr.bf16.mxu0 0
    %436 = vmatpush1.bf16.msra.mxu0 0
    %437 = vmatprep.subr.bf16.mxu0 0
    %438 = vmatpush1.bf16.msra.mxu0 0
    %439 = vmatprep.subr.bf16.mxu0 0
    %440 = vmatpush1.bf16.msra.mxu0 0
    %441 = vmatprep.subr.bf16.mxu0 0
    %442 = vmatpush1.bf16.msra.mxu0 0
    %443 = vmatprep.subr.bf16.mxu0 0
    %444 = vmatpush1.bf16.msra.mxu0 0
    %445 = vmatprep.subr.bf16.mxu0 0
    %446 = vmatpush1.bf16.msra.mxu0 0
    %447 = vmatprep.subr.bf16.mxu0 0
    %448 = vmatpush1.bf16.msra.mxu0 0
    %449 = vmatprep.subr.bf16.mxu0 0
    %450 = vmatpush1.bf16.msra.mxu0 0
    %451 = vmatprep.subr.bf16.mxu0 0
    %452 = vmatpush1.bf16.msra.mxu0 0
    %453 = vmatprep.mubr.bf16.mxu0 0
    %454 = vmatmul.mubr.bf16.gmra.mrb[0].mxu0 %v413
    %v455 = vpop.f32.mrb[0].mxu0
    %v456 = vadd.f32 %v397, %v455
    %v457 = vpop.f32.mrb[0].mxu0
    %v458 = vadd.f32 %v399, %v457
    %v459 = vpop.f32.mrb[0].mxu0
    %v460 = vpop.f32.mrb[0].mxu0
    %461 = vdwg.mxu0
    %v462 = vld [vmem:[%s323] sm:$0x3f]
    %v463 = vld [vmem:[%s220] sm:$0xf]
    %v465 = vcombine.high %v462, %v462
    %v467 = vunpack.c.l.s4 1983009808
    %v468 = vunpack.c.0.s8 %v467
    %v469 = vlaneseq
    %v470 = vshrl.u32 %v469, 7
    %v471 = vsub.s32 %v468, %v470
    %v472 = vrot.slane %v462, %v471
    %v474 = vunpack.c.l.s4 1983009808
    %v475 = vunpack.c.0.s8 %v474
    %v476 = vlaneseq
    %v477 = vshrl.u32 %v476, 7
    %v478 = vsub.s32 %v475, %v477
    %v479 = vrot.slane %v465, %v478
    %v480 = vcombine.high %v472, %v472
    %481 = vrot.lane.b32.xlu0 %v472, 126
    %v482 = vpop.permute.xlu0 %481
    %483 = vrot.lane.b32.xlu0 %v480, 126
    %v484 = vpop.permute.xlu0 %483
    %485 = vrot.lane.b32.xlu0 %v479, 126
    %v486 = vpop.permute.xlu0 %485
    %v487 = vsel %vm245, %v482, %v484
    %v488 = vsel %vm245, %v484, %v486
    %v490 = vsel %vm108, %v463, 0
    %v493 = vsel %vm112, %v487, 0
    %v496 = vsel %vm112, %v488, 0
    %498 = vmatprep.subr.bf16.mxu0 %v496
    %499 = vmatpush1.bf16.msra.mxu0 %v493
    %500 = vmatprep.subr.bf16.mxu0 0
    %501 = vmatpush1.bf16.msra.mxu0 0
    %502 = vmatprep.subr.bf16.mxu0 0
    %503 = vmatpush1.bf16.msra.mxu0 0
    %504 = vmatprep.subr.bf16.mxu0 0
    %505 = vmatpush1.bf16.msra.mxu0 0
    %506 = vmatprep.subr.bf16.mxu0 0
    %507 = vmatpush1.bf16.msra.mxu0 0
    %508 = vmatprep.subr.bf16.mxu0 0
    %509 = vmatpush1.bf16.msra.mxu0 0
    %510 = vmatprep.subr.bf16.mxu0 0
    %511 = vmatpush1.bf16.msra.mxu0 0
    %512 = vmatprep.subr.bf16.mxu0 0
    %513 = vmatpush1.bf16.msra.mxu0 0
    %514 = vmatprep.subr.bf16.mxu0 0
    %515 = vmatpush1.bf16.msra.mxu0 0
    %516 = vmatprep.subr.bf16.mxu0 0
    %517 = vmatpush1.bf16.msra.mxu0 0
    %518 = vmatprep.subr.bf16.mxu0 0
    %519 = vmatpush1.bf16.msra.mxu0 0
    %520 = vmatprep.subr.bf16.mxu0 0
    %521 = vmatpush1.bf16.msra.mxu0 0
    %522 = vmatprep.subr.bf16.mxu0 0
    %523 = vmatpush1.bf16.msra.mxu0 0
    %524 = vmatprep.subr.bf16.mxu0 0
    %525 = vmatpush1.bf16.msra.mxu0 0
    %526 = vmatprep.subr.bf16.mxu0 0
    %527 = vmatpush1.bf16.msra.mxu0 0
    %528 = vmatprep.subr.bf16.mxu0 0
    %529 = vmatpush1.bf16.msra.mxu0 0
    %530 = vmatprep.mubr.bf16.mxu0 0
    %531 = vmatmul.mubr.bf16.gmra.mrb[0].mxu0 %v490
    %v532 = vpop.f32.mrb[0].mxu0
    %v533 = vadd.f32 0.0, %v532
    %v534 = vpop.f32.mrb[0].mxu0
    %v535 = vadd.f32 0.0, %v534
    %v536 = vpop.f32.mrb[0].mxu0
    %v537 = vpop.f32.mrb[0].mxu0
    %538 = vdwg.mxu0
    %v539 = vadd.f32 %v456, %v533
    %v540 = vadd.f32 %v458, %v535
    %v541 = vadd.f32 %v539, %v303
    %v542 = vadd.f32 %v540, %v303
    %s543 = sadd.s32 %s307, 1
    %s544 = smul.u32 %s543, 2
    %s545 = smul.addr %s544, 8
    %s546 = scalar_lea.vmem [#allocation5], %s545
    %547 = vst [vmem:[%s546] sm:$0xff] %v541
    %548 = vst [vmem:[%s546 + $0x8] sm:$0xff] %v542
    %v549 = vadd.f32 %v541, %v542
    %550 = vadd.xlane.f32.xlu0 %v549
    %v551 = vpop.xlane.xlu0 %550
    %v552 = vadd.f32 %v316, %v551
    %v553 = vmul.f32 %v541, %v541
    %v554 = vmul.f32 %v542, %v542
    %v555 = vadd.f32 %v553, %v554
    %556 = vadd.xlane.f32.xlu0 %v555
    %v557 = vpop.xlane.xlu0 %556
    %v558 = vadd.f32 %v322, %v557
    %s559 = scalar_lea.vmem [#allocation2], 12
    %v560 = vld [vmem:[%s559] sm:$0xf]
    %v561 = vld [vmem:[%s1] sm:$0xf]
    %v562 = vld [vmem:[%s559] sm:$0x3f]
    %v563 = vld [vmem:[%s80] sm:$0xf]
    %v565 = vcombine.high %v562, %v562
    %v567 = vunpack.c.l.s4 1983009808
    %v568 = vunpack.c.0.s8 %v567
    %v569 = vlaneseq
    %v570 = vshrl.u32 %v569, 7
    %v571 = vsub.s32 %v568, %v570
    %v572 = vrot.slane %v562, %v571
    %v574 = vunpack.c.l.s4 1983009808
    %v575 = vunpack.c.0.s8 %v574
    %v576 = vlaneseq
    %v577 = vshrl.u32 %v576, 7
    %v578 = vsub.s32 %v575, %v577
    %v579 = vrot.slane %v565, %v578
    %v580 = vcombine.high %v572, %v572
    %581 = vrot.lane.b32.xlu0 %v572, 127
    %v582 = vpop.permute.xlu0 %581
    %583 = vrot.lane.b32.xlu0 %v580, 127
    %v584 = vpop.permute.xlu0 %583
    %585 = vrot.lane.b32.xlu0 %v579, 127
    %v586 = vpop.permute.xlu0 %585
    %v587 = vsel %vm105, %v582, %v584
    %v588 = vsel %vm105, %v584, %v586
    %v590 = vsel %vm108, %v563, 0
    %v593 = vsel %vm112, %v587, 0
    %v596 = vsel %vm112, %v588, 0
    %598 = vmatprep.subr.bf16.mxu0 %v596
    %599 = vmatpush1.bf16.msra.mxu0 %v593
    %600 = vmatprep.subr.bf16.mxu0 0
    %601 = vmatpush1.bf16.msra.mxu0 0
    %602 = vmatprep.subr.bf16.mxu0 0
    %603 = vmatpush1.bf16.msra.mxu0 0
    %604 = vmatprep.subr.bf16.mxu0 0
    %605 = vmatpush1.bf16.msra.mxu0 0
    %606 = vmatprep.subr.bf16.mxu0 0
    %607 = vmatpush1.bf16.msra.mxu0 0
    %608 = vmatprep.subr.bf16.mxu0 0
    %609 = vmatpush1.bf16.msra.mxu0 0
    %610 = vmatprep.subr.bf16.mxu0 0
    %611 = vmatpush1.bf16.msra.mxu0 0
    %612 = vmatprep.subr.bf16.mxu0 0
    %613 = vmatpush1.bf16.msra.mxu0 0
    %614 = vmatprep.subr.bf16.mxu0 0
    %615 = vmatpush1.bf16.msra.mxu0 0
    %616 = vmatprep.subr.bf16.mxu0 0
    %617 = vmatpush1.bf16.msra.mxu0 0
    %618 = vmatprep.subr.bf16.mxu0 0
    %619 = vmatpush1.bf16.msra.mxu0 0
    %620 = vmatprep.subr.bf16.mxu0 0
    %621 = vmatpush1.bf16.msra.mxu0 0
    %622 = vmatprep.subr.bf16.mxu0 0
    %623 = vmatpush1.bf16.msra.mxu0 0
    %624 = vmatprep.subr.bf16.mxu0 0
    %625 = vmatpush1.bf16.msra.mxu0 0
    %626 = vmatprep.subr.bf16.mxu0 0
    %627 = vmatpush1.bf16.msra.mxu0 0
    %628 = vmatprep.subr.bf16.mxu0 0
    %629 = vmatpush1.bf16.msra.mxu0 0
    %630 = vmatprep.mubr.bf16.mxu0 0
    %631 = vmatmul.mubr.bf16.gmra.mrb[0].mxu0 %v590
    %v632 = vpop.f32.mrb[0].mxu0
    %v633 = vadd.f32 0.0, %v632
    %v634 = vpop.f32.mrb[0].mxu0
    %v635 = vadd.f32 0.0, %v634
    %v636 = vpop.f32.mrb[0].mxu0
    %v637 = vpop.f32.mrb[0].mxu0
    %638 = vdwg.mxu0
    %v641 = vunpack.c.l.s4 1983009808
    %v642 = vunpack.c.0.s8 %v641
    %v643 = vlaneseq
    %v644 = vshrl.u32 %v643, 7
    %v645 = vsub.s32 %v642, %v644
    %v646 = vrot.slane %v560, %v645
    %v647 = vcombine.high %v646, %v646
    %v649 = vsel %vm108, %v561, 0
    %v652 = vsel %vm112, %v646, 0
    %v655 = vsel %vm112, %v647, 0
    %657 = vmatprep.subr.bf16.mxu0 %v655
    %658 = vmatpush1.bf16.msra.mxu0 %v652
    %659 = vmatprep.subr.bf16.mxu0 0
    %660 = vmatpush1.bf16.msra.mxu0 0
    %661 = vmatprep.subr.bf16.mxu0 0
    %662 = vmatpush1.bf16.msra.mxu0 0
    %663 = vmatprep.subr.bf16.mxu0 0
    %664 = vmatpush1.bf16.msra.mxu0 0
    %665 = vmatprep.subr.bf16.mxu0 0
    %666 = vmatpush1.bf16.msra.mxu0 0
    %667 = vmatprep.subr.bf16.mxu0 0
    %668 = vmatpush1.bf16.msra.mxu0 0
    %669 = vmatprep.subr.bf16.mxu0 0
    %670 = vmatpush1.bf16.msra.mxu0 0
    %671 = vmatprep.subr.bf16.mxu0 0
    %672 = vmatpush1.bf16.msra.mxu0 0
    %673 = vmatprep.subr.bf16.mxu0 0
    %674 = vmatpush1.bf16.msra.mxu0 0
    %675 = vmatprep.subr.bf16.mxu0 0
    %676 = vmatpush1.bf16.msra.mxu0 0
    %677 = vmatprep.subr.bf16.mxu0 0
    %678 = vmatpush1.bf16.msra.mxu0 0
    %679 = vmatprep.subr.bf16.mxu0 0
    %680 = vmatpush1.bf16.msra.mxu0 0
    %681 = vmatprep.subr.bf16.mxu0 0
    %682 = vmatpush1.bf16.msra.mxu0 0
    %683 = vmatprep.subr.bf16.mxu0 0
    %684 = vmatpush1.bf16.msra.mxu0 0
    %685 = vmatprep.subr.bf16.mxu0 0
    %686 = vmatpush1.bf16.msra.mxu0 0
    %687 = vmatprep.subr.bf16.mxu0 0
    %688 = vmatpush1.bf16.msra.mxu0 0
    %689 = vmatprep.mubr.bf16.mxu0 0
    %690 = vmatmul.mubr.bf16.gmra.mrb[0].mxu0 %v649
    %v691 = vpop.f32.mrb[0].mxu0
    %v692 = vadd.f32 %v633, %v691
    %v693 = vpop.f32.mrb[0].mxu0
    %v694 = vadd.f32 %v635, %v693
    %v695 = vpop.f32.mrb[0].mxu0
    %v696 = vpop.f32.mrb[0].mxu0
    %697 = vdwg.mxu0
    %v698 = vld [vmem:[%s559] sm:$0x3f]
    %v699 = vld [vmem:[%s220] sm:$0xf]
    %v701 = vcombine.high %v698, %v698
    %v703 = vunpack.c.l.s4 1983009808
    %v704 = vunpack.c.0.s8 %v703
    %v705 = vlaneseq
    %v706 = vshrl.u32 %v705, 7
    %v707 = vsub.s32 %v704, %v706
    %v708 = vrot.slane %v698, %v707
    %v710 = vunpack.c.l.s4 1983009808
    %v711 = vunpack.c.0.s8 %v710
    %v712 = vlaneseq
    %v713 = vshrl.u32 %v712, 7
    %v714 = vsub.s32 %v711, %v713
    %v715 = vrot.slane %v701, %v714
    %v716 = vcombine.high %v708, %v708
    %717 = vrot.lane.b32.xlu0 %v708, 126
    %v718 = vpop.permute.xlu0 %717
    %719 = vrot.lane.b32.xlu0 %v716, 126
    %v720 = vpop.permute.xlu0 %719
    %721 = vrot.lane.b32.xlu0 %v715, 126
    %v722 = vpop.permute.xlu0 %721
    %v723 = vsel %vm245, %v718, %v720
    %v724 = vsel %vm245, %v720, %v722
    %v726 = vsel %vm108, %v699, 0
    %v729 = vsel %vm112, %v723, 0
    %v732 = vsel %vm112, %v724, 0
    %734 = vmatprep.subr.bf16.mxu0 %v732
    %735 = vmatpush1.bf16.msra.mxu0 %v729
    %736 = vmatprep.subr.bf16.mxu0 0
    %737 = vmatpush1.bf16.msra.mxu0 0
    %738 = vmatprep.subr.bf16.mxu0 0
    %739 = vmatpush1.bf16.msra.mxu0 0
    %740 = vmatprep.subr.bf16.mxu0 0
    %741 = vmatpush1.bf16.msra.mxu0 0
    %742 = vmatprep.subr.bf16.mxu0 0
    %743 = vmatpush1.bf16.msra.mxu0 0
    %744 = vmatprep.subr.bf16.mxu0 0
    %745 = vmatpush1.bf16.msra.mxu0 0
    %746 = vmatprep.subr.bf16.mxu0 0
    %747 = vmatpush1.bf16.msra.mxu0 0
    %748 = vmatprep.subr.bf16.mxu0 0
    %749 = vmatpush1.bf16.msra.mxu0 0
    %750 = vmatprep.subr.bf16.mxu0 0
    %751 = vmatpush1.bf16.msra.mxu0 0
    %752 = vmatprep.subr.bf16.mxu0 0
    %753 = vmatpush1.bf16.msra.mxu0 0
    %754 = vmatprep.subr.bf16.mxu0 0
    %755 = vmatpush1.bf16.msra.mxu0 0
    %756 = vmatprep.subr.bf16.mxu0 0
    %757 = vmatpush1.bf16.msra.mxu0 0
    %758 = vmatprep.subr.bf16.mxu0 0
    %759 = vmatpush1.bf16.msra.mxu0 0
    %760 = vmatprep.subr.bf16.mxu0 0
    %761 = vmatpush1.bf16.msra.mxu0 0
    %762 = vmatprep.subr.bf16.mxu0 0
    %763 = vmatpush1.bf16.msra.mxu0 0
    %764 = vmatprep.subr.bf16.mxu0 0
    %765 = vmatpush1.bf16.msra.mxu0 0
    %766 = vmatprep.mubr.bf16.mxu0 0
    %767 = vmatmul.mubr.bf16.gmra.mrb[0].mxu0 %v726
    %v768 = vpop.f32.mrb[0].mxu0
    %v769 = vadd.f32 0.0, %v768
    %v770 = vpop.f32.mrb[0].mxu0
    %v771 = vadd.f32 0.0, %v770
    %v772 = vpop.f32.mrb[0].mxu0
    %v773 = vpop.f32.mrb[0].mxu0
    %774 = vdwg.mxu0
    %v775 = vadd.f32 %v692, %v769
    %v776 = vadd.f32 %v694, %v771
    %v777 = vadd.f32 %v775, %v303
    %v778 = vadd.f32 %v776, %v303
    %s779 = sadd.s32 %s307, 2
    %s780 = smul.u32 %s779, 2
    %s781 = smul.addr %s780, 8
    %s782 = scalar_lea.vmem [#allocation5], %s781
    %783 = vst [vmem:[%s782] sm:$0xff] %v777
    %784 = vst [vmem:[%s782 + $0x8] sm:$0xff] %v778
    %v785 = vadd.f32 %v777, %v778
    %786 = vadd.xlane.f32.xlu0 %v785
    %v787 = vpop.xlane.xlu0 %786
    %v788 = vadd.f32 %v552, %v787
    %v789 = vmul.f32 %v777, %v777
    %v790 = vmul.f32 %v778, %v778
    %v791 = vadd.f32 %v789, %v790
    %792 = vadd.xlane.f32.xlu0 %v791
    %v793 = vpop.xlane.xlu0 %792
    %v794 = vadd.f32 %v558, %v793
    %s795 = scalar_lea.vmem [#allocation2], 18
    %v796 = vld [vmem:[%s795] sm:$0xf]
    %v797 = vld [vmem:[%s1] sm:$0xf]
    %v798 = vld [vmem:[%s795] sm:$0x3f]
    %v799 = vld [vmem:[%s80] sm:$0xf]
    %v801 = vcombine.high %v798, %v798
    %v803 = vunpack.c.l.s4 1983009808
    %v804 = vunpack.c.0.s8 %v803
    %v805 = vlaneseq
    %v806 = vshrl.u32 %v805, 7
    %v807 = vsub.s32 %v804, %v806
    %v808 = vrot.slane %v798, %v807
    %v810 = vunpack.c.l.s4 1983009808
    %v811 = vunpack.c.0.s8 %v810
    %v812 = vlaneseq
    %v813 = vshrl.u32 %v812, 7
    %v814 = vsub.s32 %v811, %v813
    %v815 = vrot.slane %v801, %v814
    %v816 = vcombine.high %v808, %v808
    %817 = vrot.lane.b32.xlu0 %v808, 127
    %v818 = vpop.permute.xlu0 %817
    %819 = vrot.lane.b32.xlu0 %v816, 127
    %v820 = vpop.permute.xlu0 %819
    %821 = vrot.lane.b32.xlu0 %v815, 127
    %v822 = vpop.permute.xlu0 %821
    %v823 = vsel %vm105, %v818, %v820
    %v824 = vsel %vm105, %v820, %v822
    %v826 = vsel %vm108, %v799, 0
    %v829 = vsel %vm112, %v823, 0
    %v832 = vsel %vm112, %v824, 0
    %834 = vmatprep.subr.bf16.mxu0 %v832
    %835 = vmatpush1.bf16.msra.mxu0 %v829
    %836 = vmatprep.subr.bf16.mxu0 0
    %837 = vmatpush1.bf16.msra.mxu0 0
    %838 = vmatprep.subr.bf16.mxu0 0
    %839 = vmatpush1.bf16.msra.mxu0 0
    %840 = vmatprep.subr.bf16.mxu0 0
    %841 = vmatpush1.bf16.msra.mxu0 0
    %842 = vmatprep.subr.bf16.mxu0 0
    %843 = vmatpush1.bf16.msra.mxu0 0
    %844 = vmatprep.subr.bf16.mxu0 0
    %845 = vmatpush1.bf16.msra.mxu0 0
    %846 = vmatprep.subr.bf16.mxu0 0
    %847 = vmatpush1.bf16.msra.mxu0 0
    %848 = vmatprep.subr.bf16.mxu0 0
    %849 = vmatpush1.bf16.msra.mxu0 0
    %850 = vmatprep.subr.bf16.mxu0 0
    %851 = vmatpush1.bf16.msra.mxu0 0
    %852 = vmatprep.subr.bf16.mxu0 0
    %853 = vmatpush1.bf16.msra.mxu0 0
    %854 = vmatprep.subr.bf16.mxu0 0
    %855 = vmatpush1.bf16.msra.mxu0 0
    %856 = vmatprep.subr.bf16.mxu0 0
    %857 = vmatpush1.bf16.msra.mxu0 0
    %858 = vmatprep.subr.bf16.mxu0 0
    %859 = vmatpush1.bf16.msra.mxu0 0
    %860 = vmatprep.subr.bf16.mxu0 0
    %861 = vmatpush1.bf16.msra.mxu0 0
    %862 = vmatprep.subr.bf16.mxu0 0
    %863 = vmatpush1.bf16.msra.mxu0 0
    %864 = vmatprep.subr.bf16.mxu0 0
    %865 = vmatpush1.bf16.msra.mxu0 0
    %866 = vmatprep.mubr.bf16.mxu0 0
    %867 = vmatmul.mubr.bf16.gmra.mrb[0].mxu0 %v826
    %v868 = vpop.f32.mrb[0].mxu0
    %v869 = vadd.f32 0.0, %v868
    %v870 = vpop.f32.mrb[0].mxu0
    %v871 = vadd.f32 0.0, %v870
    %v872 = vpop.f32.mrb[0].mxu0
    %v873 = vpop.f32.mrb[0].mxu0
    %874 = vdwg.mxu0
    %v877 = vunpack.c.l.s4 1983009808
    %v878 = vunpack.c.0.s8 %v877
    %v879 = vlaneseq
    %v880 = vshrl.u32 %v879, 7
    %v881 = vsub.s32 %v878, %v880
    %v882 = vrot.slane %v796, %v881
    %v883 = vcombine.high %v882, %v882
    %v885 = vsel %vm108, %v797, 0
    %v888 = vsel %vm112, %v882, 0
    %v891 = vsel %vm112, %v883, 0
    %893 = vmatprep.subr.bf16.mxu0 %v891
    %894 = vmatpush1.bf16.msra.mxu0 %v888
    %895 = vmatprep.subr.bf16.mxu0 0
    %896 = vmatpush1.bf16.msra.mxu0 0
    %897 = vmatprep.subr.bf16.mxu0 0
    %898 = vmatpush1.bf16.msra.mxu0 0
    %899 = vmatprep.subr.bf16.mxu0 0
    %900 = vmatpush1.bf16.msra.mxu0 0
    %901 = vmatprep.subr.bf16.mxu0 0
    %902 = vmatpush1.bf16.msra.mxu0 0
    %903 = vmatprep.subr.bf16.mxu0 0
    %904 = vmatpush1.bf16.msra.mxu0 0
    %905 = vmatprep.subr.bf16.mxu0 0
    %906 = vmatpush1.bf16.msra.mxu0 0
    %907 = vmatprep.subr.bf16.mxu0 0
    %908 = vmatpush1.bf16.msra.mxu0 0
    %909 = vmatprep.subr.bf16.mxu0 0
    %910 = vmatpush1.bf16.msra.mxu0 0
    %911 = vmatprep.subr.bf16.mxu0 0
    %912 = vmatpush1.bf16.msra.mxu0 0
    %913 = vmatprep.subr.bf16.mxu0 0
    %914 = vmatpush1.bf16.msra.mxu0 0
    %915 = vmatprep.subr.bf16.mxu0 0
    %916 = vmatpush1.bf16.msra.mxu0 0
    %917 = vmatprep.subr.bf16.mxu0 0
    %918 = vmatpush1.bf16.msra.mxu0 0
    %919 = vmatprep.subr.bf16.mxu0 0
    %920 = vmatpush1.bf16.msra.mxu0 0
    %921 = vmatprep.subr.bf16.mxu0 0
    %922 = vmatpush1.bf16.msra.mxu0 0
    %923 = vmatprep.subr.bf16.mxu0 0
    %924 = vmatpush1.bf16.msra.mxu0 0
    %925 = vmatprep.mubr.bf16.mxu0 0
    %926 = vmatmul.mubr.bf16.gmra.mrb[0].mxu0 %v885
    %v927 = vpop.f32.mrb[0].mxu0
    %v928 = vadd.f32 %v869, %v927
    %v929 = vpop.f32.mrb[0].mxu0
    %v930 = vadd.f32 %v871, %v929
    %v931 = vpop.f32.mrb[0].mxu0
    %v932 = vpop.f32.mrb[0].mxu0
    %933 = vdwg.mxu0
    %v934 = vld [vmem:[%s795] sm:$0x3f]
    %v935 = vld [vmem:[%s220] sm:$0xf]
    %v937 = vcombine.high %v934, %v934
    %v939 = vunpack.c.l.s4 1983009808
    %v940 = vunpack.c.0.s8 %v939
    %v941 = vlaneseq
    %v942 = vshrl.u32 %v941, 7
    %v943 = vsub.s32 %v940, %v942
    %v944 = vrot.slane %v934, %v943
    %v946 = vunpack.c.l.s4 1983009808
    %v947 = vunpack.c.0.s8 %v946
    %v948 = vlaneseq
    %v949 = vshrl.u32 %v948, 7
    %v950 = vsub.s32 %v947, %v949
    %v951 = vrot.slane %v937, %v950
    %v952 = vcombine.high %v944, %v944
    %953 = vrot.lane.b32.xlu0 %v944, 126
    %v954 = vpop.permute.xlu0 %953
    %955 = vrot.lane.b32.xlu0 %v952, 126
    %v956 = vpop.permute.xlu0 %955
    %957 = vrot.lane.b32.xlu0 %v951, 126
    %v958 = vpop.permute.xlu0 %957
    %v959 = vsel %vm245, %v954, %v956
    %v960 = vsel %vm245, %v956, %v958
    %v962 = vsel %vm108, %v935, 0
    %v965 = vsel %vm112, %v959, 0
    %v968 = vsel %vm112, %v960, 0
    %970 = vmatprep.subr.bf16.mxu0 %v968
    %971 = vmatpush1.bf16.msra.mxu0 %v965
    %972 = vmatprep.subr.bf16.mxu0 0
    %973 = vmatpush1.bf16.msra.mxu0 0
    %974 = vmatprep.subr.bf16.mxu0 0
    %975 = vmatpush1.bf16.msra.mxu0 0
    %976 = vmatprep.subr.bf16.mxu0 0
    %977 = vmatpush1.bf16.msra.mxu0 0
    %978 = vmatprep.subr.bf16.mxu0 0
    %979 = vmatpush1.bf16.msra.mxu0 0
    %980 = vmatprep.subr.bf16.mxu0 0
    %981 = vmatpush1.bf16.msra.mxu0 0
    %982 = vmatprep.subr.bf16.mxu0 0
    %983 = vmatpush1.bf16.msra.mxu0 0
    %984 = vmatprep.subr.bf16.mxu0 0
    %985 = vmatpush1.bf16.msra.mxu0 0
    %986 = vmatprep.subr.bf16.mxu0 0
    %987 = vmatpush1.bf16.msra.mxu0 0
    %988 = vmatprep.subr.bf16.mxu0 0
    %989 = vmatpush1.bf16.msra.mxu0 0
    %990 = vmatprep.subr.bf16.mxu0 0
    %991 = vmatpush1.bf16.msra.mxu0 0
    %992 = vmatprep.subr.bf16.mxu0 0
    %993 = vmatpush1.bf16.msra.mxu0 0
    %994 = vmatprep.subr.bf16.mxu0 0
    %995 = vmatpush1.bf16.msra.mxu0 0
    %996 = vmatprep.subr.bf16.mxu0 0
    %997 = vmatpush1.bf16.msra.mxu0 0
    %998 = vmatprep.subr.bf16.mxu0 0
    %999 = vmatpush1.bf16.msra.mxu0 0
    %1000 = vmatprep.subr.bf16.mxu0 0
    %1001 = vmatpush1.bf16.msra.mxu0 0
    %1002 = vmatprep.mubr.bf16.mxu0 0
    %1003 = vmatmul.mubr.bf16.gmra.mrb[0].mxu0 %v962
    %v1004 = vpop.f32.mrb[0].mxu0
    %v1005 = vadd.f32 0.0, %v1004
    %v1006 = vpop.f32.mrb[0].mxu0
    %v1007 = vadd.f32 0.0, %v1006
    %v1008 = vpop.f32.mrb[0].mxu0
    %v1009 = vpop.f32.mrb[0].mxu0
    %1010 = vdwg.mxu0
    %v1011 = vadd.f32 %v928, %v1005
    %v1012 = vadd.f32 %v930, %v1007
    %v1013 = vadd.f32 %v1011, %v303
    %v1014 = vadd.f32 %v1012, %v303
    %s1015 = sadd.s32 %s307, 3
    %s1016 = smul.u32 %s1015, 2
    %s1017 = smul.addr %s1016, 8
    %s1018 = scalar_lea.vmem [#allocation5], %s1017
    %1019 = vst [vmem:[%s1018] sm:$0xff] %v1013
    %1020 = vst [vmem:[%s1018 + $0x8] sm:$0xff] %v1014
    %v1021 = vadd.f32 %v1013, %v1014
    %1022 = vadd.xlane.f32.xlu0 %v1021
    %v1023 = vpop.xlane.xlu0 %1022
    %v1024 = vadd.f32 %v788, %v1023
    %v1025 = vmul.f32 %v1013, %v1013
    %v1026 = vmul.f32 %v1014, %v1014
    %v1027 = vadd.f32 %v1025, %v1026
    %1028 = vadd.xlane.f32.xlu0 %v1027
    %v1029 = vpop.xlane.xlu0 %1028
    %v1030 = vadd.f32 %v794, %v1029
    %v1031 = vld [vmem:[#allocation3] sm:$0xff]
    %v1032 = vadd.f32 %v1031, %v1024
    %vm1033 = vcmask 7168
    %1034 = vst.msk [vmem:[#allocation3] sm:$0xff] %vm1033, %v1032
    %v1035 = vld [vmem:[#allocation4] sm:$0xff]
    %v1036 = vadd.f32 %v1035, %v1030
    %1037 = vst.msk [vmem:[#allocation4] sm:$0xff] %vm1033, %v1036
    // Predicated region
    $region26: #{cnn_block_forward.1} parent=1 // pred_check
      %p1038 = pneg %p22
    $region27: #{cnn_block_forward.1} parent=1 // pred_check_branch
      %1040 = sbr.rel (%p1038) target = $region29
    $region28: #{cnn_block_forward.1} parent=1 // pred_region
      %v1041 = vld [vmem:[#allocation3] sm:$0xff]
      %v1042 = vmul.f32 %v1041, 0.0009765625
      %v1043 = vld [vmem:[#allocation4] sm:$0xff]
      %v1044 = vmul.f32 %v1043, 0.0009765625
      %v1045 = vmul.f32 %v1042, %v1042
      %v1046 = vsub.f32 %v1044, %v1045
      %v1047 = vmax.f32 %v1046, 0.0
      %v1048 = vld [vmem:[%s3] sm:$0xff]
      %v1049 = vadd.f32 %v1047, 1e-05
      %v1050 = vrsqrt.pop %v1049
      %v1051 = vmul.f32 %v1048, %v1050
      %v1052 = vld [vmem:[%s4] sm:$0xff]
      %v1053 = vmul.f32 %v1042, %v1051
      %v1054 = vsub.f32 %v1052, %v1053
      %v1055 = vld [vmem:[#allocation5] sm:$0xff]
      %v1056 = vld [vmem:[#allocation5 + $0x8] sm:$0xff]
      %v1057 = vld [vmem:[#allocation5 + $0x10] sm:$0xff]
      %v1058 = vld [vmem:[#allocation5 + $0x18] sm:$0xff]
      %v1059 = vld [vmem:[#allocation5 + $0x20] sm:$0xff]
      %v1060 = vld [vmem:[#allocation5 + $0x28] sm:$0xff]
      %v1061 = vld [vmem:[#allocation5 + $0x30] sm:$0xff]
      %v1062 = vld [vmem:[#allocation5 + $0x38] sm:$0xff]
      %1064 = vset.pattern.permute.xlu0 0
      %1065 = vperm.xlu0 %1064, %v1051
      %v1066 = vpop.permute.xlu0 %1065
      %v1068 = vmul.f32 %v1055, %v1066
      %v1069 = vmul.f32 %v1056, %v1066
      %v1070 = vmul.f32 %v1057, %v1066
      %v1071 = vmul.f32 %v1058, %v1066
      %v1072 = vmul.f32 %v1059, %v1066
      %v1073 = vmul.f32 %v1060, %v1066
      %v1074 = vmul.f32 %v1061, %v1066
      %v1075 = vmul.f32 %v1062, %v1066
      %1077 = vset.pattern.permute.xlu0 0
      %1078 = vperm.xlu0 %1077, %v1054
      %v1079 = vpop.permute.xlu0 %1078
      %v1081 = vadd.f32 %v1068, %v1079
      %v1082 = vadd.f32 %v1069, %v1079
      %v1083 = vadd.f32 %v1070, %v1079
      %v1084 = vadd.f32 %v1071, %v1079
      %v1085 = vadd.f32 %v1072, %v1079
      %v1086 = vadd.f32 %v1073, %v1079
      %v1087 = vadd.f32 %v1074, %v1079
      %v1088 = vadd.f32 %v1075, %v1079
      %v1089 = vmax.f32 %v1081, 0.0
      %v1090 = vmax.f32 %v1082, 0.0
      %v1091 = vmax.f32 %v1083, 0.0
      %v1092 = vmax.f32 %v1084, 0.0
      %v1093 = vmax.f32 %v1085, 0.0
      %v1094 = vmax.f32 %v1086, 0.0
      %v1095 = vmax.f32 %v1087, 0.0
      %v1096 = vmax.f32 %v1088, 0.0
      %1097 = vst [vmem:[#allocation5] sm:$0xff] %v1089
      %1098 = vst [vmem:[#allocation5 + $0x8] sm:$0xff] %v1090
      %1099 = vst [vmem:[#allocation5 + $0x10] sm:$0xff] %v1091
      %1100 = vst [vmem:[#allocation5 + $0x18] sm:$0xff] %v1092
      %1101 = vst [vmem:[#allocation5 + $0x20] sm:$0xff] %v1093
      %1102 = vst [vmem:[#allocation5 + $0x28] sm:$0xff] %v1094
      %1103 = vst [vmem:[#allocation5 + $0x30] sm:$0xff] %v1095
      %1104 = vst [vmem:[#allocation5 + $0x38] sm:$0xff] %v1096
    $region29: #{cnn_block_forward.1} parent=1 // pred_fallthru
      _
    // Predicated region
    $region30: #{cnn_block_forward.1} parent=1 // pred_check
      _
    $region31: #{cnn_block_forward.1} parent=1 // pred_check_branch
      %1106 = sbr.rel (0) target = $region33
    $region32: #{cnn_block_forward.1} parent=1 // pred_region
      %s1108 = ssub.s32 1024, 1024
      %1109 = vsyncadd [#allocation6], %s1108
      %s1110 = sshll.u32 [#allocation5], 4
      %s1111 = int_to_ptr.vmem [resolvable:$true] %s1110
      %1116 = dma.vmem_to_hbm [thread:$0]  %s1111, 1024, %s5, [#allocation6], 256, 256, 16
    $region33: #{cnn_block_forward.1} parent=1 // pred_fallthru
      _
    // Predicated region
    $region34: #{cnn_block_forward.1} parent=1 // pred_check
      _
    $region35: #{cnn_block_forward.1} parent=1 // pred_check_branch
      %1118 = sbr.rel (0) target = $region37
    $region36: #{cnn_block_forward.1} parent=1 // pred_region
      %1119 = dma.done [#allocation6], 1024
    $region37: #{cnn_block_forward.1} parent=1 // pred_fallthru
      _
    %1120 = vsyncpa [#allocation6], 1

</llo_original>
